<compile_context>
chip_gen: v7x
topology: tpu7x:2x2x1
jax: 0.10.0
libtpu: 0.0.40
codegen_flags: <defaults>
</compile_context>

<pallas_src>
import jax
import jax.numpy as jnp
from jax.experimental import pallas as pl
from jax.experimental.pallas import tpu as pltpu

IN_DIM = 31
HID_DIM = 176
OUT_DIM = 28 * 28 * 3  # 2352


def _round_up(x, m):
    return (x + m - 1) // m * m


OUT_PAD = _round_up(OUT_DIM, 128)  # 2432 = 19 * 128 (lane-dense output)


def decoder_kernel(x_ref, w1_ref, b1_ref, w2_ref, b2_ref, o_ref):
    # x_ref:  (TB, 31) f32      w1_ref: (31, 176) bf16    b1_ref: (1, 176) f32
    # w2_ref: (176, 2432) bf16  b2_ref: (1, 2432) f32     o_ref:  (TB, 2432) f32
    x = x_ref[...].astype(jnp.bfloat16)

    # First linear + ReLU (bf16 MXU matmul, f32 accumulate).
    h = jnp.dot(x, w1_ref[...], preferred_element_type=jnp.float32) + b1_ref[...]
    h = jnp.maximum(h, 0.0)

    # Second linear + sigmoid. sigmoid(y) == 0.5*(tanh(0.5*y)+1): single EUP op.
    y = jnp.dot(h.astype(jnp.bfloat16), w2_ref[...],
                preferred_element_type=jnp.float32) + b2_ref[...]
    o_ref[...] = (0.5 * (jnp.tanh(0.5 * y) + 1.0)).astype(o_ref.dtype)


def decoder_forward(feature_v, w1, b1, w2, b2, *, block_b=512):
    """feature_v: (B, 31) float32. Returns (B, 2352) float32 in [0, 1].

    w1: (31, 176), b1: (1, 176), w2: (176, 2352), b2: (1, 2352) — all float32
    (cast/pad handled here).
    """
    B = feature_v.shape[0]

    # bf16 weights: halves the dominant HBM traffic (w2), native MXU input.
    w1_bf = w1.astype(jnp.bfloat16)
    w2_bf = w2.astype(jnp.bfloat16)

    # Pad output feature dim to a multiple of 128 for lane-dense stores / tiling.
    pad_n = OUT_PAD - OUT_DIM
    w2_p = jnp.pad(w2_bf, ((0, 0), (0, pad_n)))
    b2_p = jnp.pad(b2, ((0, 0), (0, pad_n)))

    # Batch tile: big enough to amortize per-step overhead, small enough that
    # double-buffered (TB, 2432) f32 output blocks fit comfortably inside the
    # default scoped VMEM on every generation (incl. v7x's 64 MiB physical).
    tb = min(block_b, _round_up(B, 8))
    b_pad = _round_up(B, tb)
    x = feature_v
    if b_pad != B:
        x = jnp.pad(x, ((0, b_pad - B), (0, 0)))

    grid = (b_pad // tb,)

    cost = pl.CostEstimate(
        flops=2 * b_pad * (IN_DIM * HID_DIM + HID_DIM * OUT_PAD),
        transcendentals=b_pad * OUT_PAD,
        bytes_accessed=(x.size * 4            # x (f32)
                        + w1_bf.size * 2 + b1.size * 4
                        + w2_p.size * 2 + b2_p.size * 4
                        + b_pad * OUT_PAD * 4),  # out (f32)
    )

    out = pl.pallas_call(
        decoder_kernel,
        out_shape=jax.ShapeDtypeStruct((b_pad, OUT_PAD), jnp.float32),
        grid=grid,
        in_specs=[
            pl.BlockSpec((tb, IN_DIM), lambda i: (i, 0)),        # x: tiled over batch
            pl.BlockSpec((IN_DIM, HID_DIM), lambda i: (0, 0)),   # w1: VMEM-resident
            pl.BlockSpec((1, HID_DIM), lambda i: (0, 0)),        # b1: VMEM-resident
            pl.BlockSpec((HID_DIM, OUT_PAD), lambda i: (0, 0)),  # w2: VMEM-resident
            pl.BlockSpec((1, OUT_PAD), lambda i: (0, 0)),        # b2: VMEM-resident
        ],
        out_specs=pl.BlockSpec((tb, OUT_PAD), lambda i: (i, 0)),
        compiler_params=pltpu.CompilerParams(
            dimension_semantics=("parallel",),  # megacore sharding on v7x
        ),
        cost_estimate=cost,
    )(x, w1_bf, b1, w2_p, b2_p)

    # Strip batch + lane padding.
    return out[:B, :OUT_DIM]


def init_params(key):
    """Deterministic init mimicking nn.Linear default: U(-1/sqrt(fan_in), +1/sqrt(fan_in))."""
    k1, k2, k3, k4 = jax.random.split(key, 4)
    s1 = 1.0 / jnp.sqrt(jnp.float32(IN_DIM))
    s2 = 1.0 / jnp.sqrt(jnp.float32(HID_DIM))
    # Stored already transposed: (in, out)
    w1 = jax.random.uniform(k1, (IN_DIM, HID_DIM), jnp.float32, -s1, s1)
    b1 = jax.random.uniform(k2, (1, HID_DIM), jnp.float32, -s1, s1)
    w2 = jax.random.uniform(k3, (HID_DIM, OUT_DIM), jnp.float32, -s2, s2)
    b2 = jax.random.uniform(k4, (1, OUT_DIM), jnp.float32, -s2, s2)
    return w1, b1, w2, b2


def _reference(feature_v, w1, b1, w2, b2):
    """Plain-JAX reference with the SAME bf16-weight / f32-accumulate math."""
    x_bf = feature_v.astype(jnp.bfloat16)
    w1_bf = w1.astype(jnp.bfloat16)
    w2_bf = w2.astype(jnp.bfloat16)
    h = jnp.maximum(
        jnp.dot(x_bf, w1_bf, preferred_element_type=jnp.float32) + b1, 0.0)
    y = jnp.dot(h.astype(jnp.bfloat16), w2_bf,
                preferred_element_type=jnp.float32) + b2
    return jax.nn.sigmoid(y)


if __name__ == "__main__":
    key = jax.random.PRNGKey(0)
    k_in, k_p = jax.random.split(key)

    w1, b1, w2, b2 = init_params(k_p)

    # --- Small batch (single grid step) ---
    batch = 8
    feature_v = jax.random.normal(k_in, (batch, IN_DIM), jnp.float32)
    out = jax.block_until_ready(decoder_forward(feature_v, w1, b1, w2, b2))
    assert out.shape == (batch, OUT_DIM)

    ref_bf = _reference(feature_v, w1, b1, w2, b2)
    assert jnp.allclose(out, ref_bf, atol=2e-3, rtol=2e-3)

    # Also stay close to the full-f32 PyTorch-equivalent forward.
    ref_f32 = jax.nn.sigmoid(
        jnp.maximum(feature_v @ w1 + b1, 0.0) @ w2 + b2)
    assert jnp.allclose(out, ref_f32, atol=2e-2, rtol=2e-2)

    # --- Larger batch (exercises the batch grid / double-buffering path) ---
    batch2 = 1024
    feature_v2 = jax.random.normal(jax.random.PRNGKey(1), (batch2, IN_DIM),
                                   jnp.float32)
    out2 = jax.block_until_ready(decoder_forward(feature_v2, w1, b1, w2, b2))
    assert out2.shape == (batch2, OUT_DIM)
    ref2 = _reference(feature_v2, w1, b1, w2, b2)
    assert jnp.allclose(out2, ref2, atol=2e-3, rtol=2e-3)

    # TODO(synk): if this decoder is called repeatedly at tiny B, batch the calls
    # (or keep weights resident via cross-call prefetch) — per-call time there is
    # dominated by weight DMA + launch overhead, not compute.

    print("KERNEL_OK")
</pallas_src>

<mosaic_0001>
module attributes {stable_mosaic.version = 11 : i64} {
  func.func @decoder_kernel(%arg0: i32, %arg1: memref<8x31xf32, #tpu.memory_space<vmem>>, %arg2: memref<31x176xbf16, #tpu.memory_space<vmem>>, %arg3: memref<1x176xf32, #tpu.memory_space<vmem>>, %arg4: memref<176x2432xbf16, #tpu.memory_space<vmem>>, %arg5: memref<1x2432xf32, #tpu.memory_space<vmem>>, %arg6: memref<8x2432xf32, #tpu.memory_space<vmem>>) attributes {dimension_semantics = [#tpu.dimension_semantics<parallel>], iteration_bounds = array<i64: 1>, scalar_prefetch = 0 : i64, scratch_operands = 0 : i64, tpu.core_type = #tpu.core_type<tc>, window_params = [{transform_indices = @transform_0, window_bounds = array<i64: 8, 31>}, {pipeline_mode = #tpu.pipeline_mode<synchronous>, transform_indices = @transform_1, window_bounds = array<i64: 31, 176>}, {pipeline_mode = #tpu.pipeline_mode<synchronous>, transform_indices = @transform_2, window_bounds = array<i64: 1, 176>}, {pipeline_mode = #tpu.pipeline_mode<synchronous>, transform_indices = @transform_3, window_bounds = array<i64: 176, 2432>}, {pipeline_mode = #tpu.pipeline_mode<synchronous>, transform_indices = @transform_4, window_bounds = array<i64: 1, 2432>}, {transform_indices = @transform_5, window_bounds = array<i64: 8, 2432>}]} {
    %c0 = arith.constant 0 : index
    %c0_0 = arith.constant 0 : index
    %0 = vector.load %arg1[%c0, %c0_0] : memref<8x31xf32, #tpu.memory_space<vmem>>, vector<8x31xf32>
    %1 = arith.truncf %0 : vector<8x31xf32> to vector<8x31xbf16>
    %c0_1 = arith.constant 0 : index
    %c0_2 = arith.constant 0 : index
    %2 = vector.load %arg2[%c0_1, %c0_2] : memref<31x176xbf16, #tpu.memory_space<vmem>>, vector<31x176xbf16>
    %cst = arith.constant dense<0.000000e+00> : vector<8x176xf32>
    %3 = tpu.matmul %1, %2, %cst {dimension_numbers = #tpu.dot_dimension_numbers<[1], [0], [0], [1], [0, 0, 1, 1], [], []>} : vector<8x31xbf16>, vector<31x176xbf16>, vector<8x176xf32> -> vector<8x176xf32>
    %c0_3 = arith.constant 0 : index
    %c0_4 = arith.constant 0 : index
    %4 = vector.load %arg3[%c0_3, %c0_4] : memref<1x176xf32, #tpu.memory_space<vmem>>, vector<1x176xf32>
    %5 = vector.broadcast %4 : vector<1x176xf32> to vector<8x176xf32>
    %6 = arith.addf %3, %5 : vector<8x176xf32>
    %cst_5 = arith.constant 0.000000e+00 : f32
    %7 = vector.broadcast %cst_5 : f32 to vector<8x176xf32>
    %8 = arith.maximumf %6, %7 : vector<8x176xf32>
    %9 = arith.truncf %8 : vector<8x176xf32> to vector<8x176xbf16>
    %c0_6 = arith.constant 0 : index
    %c0_7 = arith.constant 0 : index
    %10 = vector.load %arg4[%c0_6, %c0_7] : memref<176x2432xbf16, #tpu.memory_space<vmem>>, vector<176x2432xbf16>
    %cst_8 = arith.constant dense<0.000000e+00> : vector<8x2432xf32>
    %11 = tpu.matmul %9, %10, %cst_8 {dimension_numbers = #tpu.dot_dimension_numbers<[1], [0], [0], [1], [0, 0, 1, 1], [], []>} : vector<8x176xbf16>, vector<176x2432xbf16>, vector<8x2432xf32> -> vector<8x2432xf32>
    %c0_9 = arith.constant 0 : index
    %c0_10 = arith.constant 0 : index
    %12 = vector.load %arg5[%c0_9, %c0_10] : memref<1x2432xf32, #tpu.memory_space<vmem>>, vector<1x2432xf32>
    %13 = vector.broadcast %12 : vector<1x2432xf32> to vector<8x2432xf32>
    %14 = arith.addf %11, %13 : vector<8x2432xf32>
    %cst_11 = arith.constant 5.000000e-01 : f32
    %15 = vector.broadcast %cst_11 : f32 to vector<8x2432xf32>
    %16 = arith.mulf %15, %14 : vector<8x2432xf32>
    %17 = math.tanh %16 : vector<8x2432xf32>
    %cst_12 = arith.constant 1.000000e+00 : f32
    %18 = vector.broadcast %cst_12 : f32 to vector<8x2432xf32>
    %19 = arith.addf %17, %18 : vector<8x2432xf32>
    %cst_13 = arith.constant 5.000000e-01 : f32
    %20 = vector.broadcast %cst_13 : f32 to vector<8x2432xf32>
    %21 = arith.mulf %20, %19 : vector<8x2432xf32>
    %c0_14 = arith.constant 0 : index
    %c0_15 = arith.constant 0 : index
    %22 = vector.load %arg6[%c0_14, %c0_15] : memref<8x2432xf32, #tpu.memory_space<vmem>>, vector<8x2432xf32>
    tpu.vector_store %arg6[%c0_14, %c0_15], %21 {strides = array<i32>} : memref<8x2432xf32, #tpu.memory_space<vmem>>, vector<8x2432xf32>,
    return
  }
  func.func @transform_0(%arg0: i32) -> (i32, i32) {
    %c0_i32 = arith.constant 0 : i32
    %c0_i32_0 = arith.constant 0 : i32
    return %arg0, %c0_i32 : i32, i32
  }
  func.func @transform_1(%arg0: i32) -> (i32, i32) {
    %c0_i32 = arith.constant 0 : i32
    %c0_i32_0 = arith.constant 0 : i32
    %c0_i32_1 = arith.constant 0 : i32
    return %c0_i32, %c0_i32_0 : i32, i32
  }
  func.func @transform_2(%arg0: i32) -> (i32, i32) {
    %c0_i32 = arith.constant 0 : i32
    %c0_i32_0 = arith.constant 0 : i32
    %c0_i32_1 = arith.constant 0 : i32
    return %c0_i32, %c0_i32_0 : i32, i32
  }
  func.func @transform_3(%arg0: i32) -> (i32, i32) {
    %c0_i32 = arith.constant 0 : i32
    %c0_i32_0 = arith.constant 0 : i32
    %c0_i32_1 = arith.constant 0 : i32
    return %c0_i32, %c0_i32_0 : i32, i32
  }
  func.func @transform_4(%arg0: i32) -> (i32, i32) {
    %c0_i32 = arith.constant 0 : i32
    %c0_i32_0 = arith.constant 0 : i32
    %c0_i32_1 = arith.constant 0 : i32
    return %c0_i32, %c0_i32_0 : i32, i32
  }
  func.func @transform_5(%arg0: i32) -> (i32, i32) {
    %c0_i32 = arith.constant 0 : i32
    %c0_i32_0 = arith.constant 0 : i32
    return %arg0, %c0_i32 : i32, i32
  }
}

</mosaic_0001>

<llo_original>
// kernel: tpu_custom_call.1
$region0: #{tpu_custom_call.1}
  #allocation0 [shape = 'u32[]', space=smem, size = 0x4, offset = 0x4, fixed_abs, tag = 'smem constant byte address 0x4 - core index']
  #allocation1 [shape = 'u32[144,128]{1,0:T(1,128)}', space=vmem, size = 0x12000, scoped, tag = 'internal scratch']
  %s0 = inlined_call_operand.hbm [shape: f32[8,31], index: 0, kind: input, shape index: {}]
  %s1 = inlined_call_operand.hbm [shape: bf16[31,176], index: 1, kind: input, shape index: {}]
  %s2 = inlined_call_operand.vmem [shape: f32[1,176], index: 2, kind: input, shape index: {}]
  %s3 = inlined_call_operand.hbm [shape: bf16[176,2432], index: 3, kind: input, shape index: {}]
  %s4 = inlined_call_operand.hbm [shape: f32[1,2432], index: 4, kind: input, shape index: {}]
  %s5 = inlined_call_operand.hbm [shape: f32[8,2432], index: 5, kind: output, shape index: {}]
  %s6 = sld [smem:[#allocation0]]
  $region46: #{tpu_custom_call.1} parent=0
    _
  %s8 = ssub.s32 1, %s6
  %s9 = scalar_select 0, %s8, %s6
  $region1: #{tpu_custom_call.1} parent=0
    #allocation2 [shape = 'u8[4096]{0}', space=vmem, size = 0x1000, scoped, tag = 'input window, operand 0, single buffered']
    #allocation3 [shape = 's32[1]{0}', space=sflag, size = 0x4, scoped, tag = 'scoped memory for tpu_custom_call.1']
    #allocation4 [shape = 's32[1]{0}', space=sflag, size = 0x4, scoped, tag = 'scoped memory for tpu_custom_call.1']
    #allocation5 [shape = 'u8[16384]{0}', space=vmem, size = 0x4000, scoped, tag = 'input window, operand 1, single buffered']
    #allocation6 [shape = 's32[1]{0}', space=sflag, size = 0x4, scoped, tag = 'scoped memory for tpu_custom_call.1']
    #allocation7 [shape = 'u8[856064]{0}', space=vmem, size = 0xd1000, scoped, tag = 'input window, operand 3, single buffered']
    #allocation8 [shape = 'u8[9728]{0}', space=vmem, size = 0x2800, scoped, tag = 'input window, operand 4, single buffered']
    #allocation9 [shape = 's32[1]{0}', space=sflag, size = 0x4, scoped, tag = 'scoped memory for tpu_custom_call.1']
    #allocation10 [shape = 'u8[77824]{0}', space=vmem, size = 0x13000, scoped, tag = 'output window, operand 0, single buffered']
    %10 = vsyncpa [#allocation3], 0
    %11 = vsyncpa [#allocation6], 0
    %12 = vsyncpa [#allocation9], 0
    %13 = vsyncpa [#allocation4], 0
    // Predicated region
    $region2: #{tpu_custom_call.1} parent=1 // pred_check
      _
    $region3: #{tpu_custom_call.1} parent=1 // pred_check_branch
      %15 = sbr.rel (0) target = $region5
    $region4: #{tpu_custom_call.1} parent=1 // pred_region
      %s17 = ssub.s32 128, 128
      %18 = vsyncadd [#allocation3], %s17
      %s20 = sshll.u32 [#allocation2], 4
      %s21 = int_to_ptr.vmem [resolvable:$true] %s20
      %23 = dma.hbm_to_vmem [thread:$0]  %s0, 128, %s21, [#allocation3]
    $region5: #{tpu_custom_call.1} parent=1 // pred_fallthru
      _
    // Predicated region
    $region6: #{tpu_custom_call.1} parent=1 // pred_check
      _
    $region7: #{tpu_custom_call.1} parent=1 // pred_check_branch
      %25 = sbr.rel (0) target = $region9
    $region8: #{tpu_custom_call.1} parent=1 // pred_region
      %s27 = ssub.s32 512, 512
      %28 = vsyncadd [#allocation6], %s27
      %s29 = sshll.u32 [#allocation5], 4
      %s30 = int_to_ptr.vmem [resolvable:$true] %s29
      %35 = dma.hbm_to_vmem [thread:$0]  %s1, 512, %s30, [#allocation6], 128, 128, 8
    $region9: #{tpu_custom_call.1} parent=1 // pred_fallthru
      _
    // Predicated region
    $region10: #{tpu_custom_call.1} parent=1 // pred_check
      _
    $region11: #{tpu_custom_call.1} parent=1 // pred_check_branch
      %37 = sbr.rel (0) target = $region13
    $region12: #{tpu_custom_call.1} parent=1 // pred_region
      _
    $region13: #{tpu_custom_call.1} parent=1 // pred_fallthru
      _
    // Predicated region
    $region14: #{tpu_custom_call.1} parent=1 // pred_check
      _
    $region15: #{tpu_custom_call.1} parent=1 // pred_check_branch
      %39 = sbr.rel (0) target = $region17
    $region16: #{tpu_custom_call.1} parent=1 // pred_region
      %s41 = ssub.s32 26752, 26752
      %42 = vsyncadd [#allocation6], %s41
      %s43 = sshll.u32 [#allocation7], 4
      %s44 = int_to_ptr.vmem [resolvable:$true] %s43
      %49 = dma.hbm_to_vmem [thread:$0]  %s3, 26752, %s44, [#allocation6], 1216, 1216, 76
    $region17: #{tpu_custom_call.1} parent=1 // pred_fallthru
      _
    // Predicated region
    $region18: #{tpu_custom_call.1} parent=1 // pred_check
      _
    $region19: #{tpu_custom_call.1} parent=1 // pred_check_branch
      %51 = sbr.rel (0) target = $region21
    $region20: #{tpu_custom_call.1} parent=1 // pred_region
      %s53 = ssub.s32 304, 304
      %54 = vsyncadd [#allocation9], %s53
      %s56 = sshll.u32 [#allocation8], 4
      %s57 = int_to_ptr.vmem [resolvable:$true] %s56
      %59 = dma.hbm_to_vmem [thread:$0]  %s4, 304, %s57, [#allocation9]
    $region21: #{tpu_custom_call.1} parent=1 // pred_fallthru
      _
    // Predicated region
    $region22: #{tpu_custom_call.1} parent=1 // pred_check
      _
    $region23: #{tpu_custom_call.1} parent=1 // pred_check_branch
      %61 = sbr.rel (0) target = $region25
    $region24: #{tpu_custom_call.1} parent=1 // pred_region
      %62 = dma.done [#allocation3], 128
    $region25: #{tpu_custom_call.1} parent=1 // pred_fallthru
      _
    // Predicated region
    $region26: #{tpu_custom_call.1} parent=1 // pred_check
      _
    $region27: #{tpu_custom_call.1} parent=1 // pred_check_branch
      %64 = sbr.rel (0) target = $region29
    $region28: #{tpu_custom_call.1} parent=1 // pred_region
      %65 = dma.done [#allocation6], 512
    $region29: #{tpu_custom_call.1} parent=1 // pred_fallthru
      _
    // Predicated region
    $region30: #{tpu_custom_call.1} parent=1 // pred_check
      _
    $region31: #{tpu_custom_call.1} parent=1 // pred_check_branch
      %67 = sbr.rel (0) target = $region33
    $region32: #{tpu_custom_call.1} parent=1 // pred_region
      %68 = dma.done [#allocation6], 26752
    $region33: #{tpu_custom_call.1} parent=1 // pred_fallthru
      _
    // Predicated region
    $region34: #{tpu_custom_call.1} parent=1 // pred_check
      _
    $region35: #{tpu_custom_call.1} parent=1 // pred_check_branch
      %70 = sbr.rel (0) target = $region37
    $region36: #{tpu_custom_call.1} parent=1 // pred_region
      %71 = dma.done [#allocation9], 304
    $region37: #{tpu_custom_call.1} parent=1 // pred_fallthru
      _
    %v73 = vld [vmem:[#allocation2] sm:$0xff]
    %v74 = vpack.c.bf16 %v73, %v73
    %v75 = vld [vmem:[#allocation5] sm:$0xff]
    %v76 = vld [vmem:[#allocation5 + $0x8] sm:$0xff]
    %v77 = vld [vmem:[#allocation5 + $0x10] sm:$0xff]
    %v78 = vld [vmem:[#allocation5 + $0x18] sm:$0xff]
    %v79 = vld [vmem:[%s2] sm:$0x3]
    %v81 = vlaneseq
    %v82 = vshrl.u32 %v81, 7
    %v83 = vsub.s32 0, %v82
    %v84 = vrot.slane %v79, %v83
    %v85 = vlaneseq
    %v86 = vshrl.u32 %v85, 7
    %v87 = vsub.s32 1, %v86
    %v88 = vrot.slane %v79, %v87
    %v95 = vunpack.c.l.b16 %v75
    %v96 = vunpack.c.h.b16 %v75
    %v97 = vunpack.c.l.b16 %v76
    %v98 = vunpack.c.h.b16 %v76
    %v99 = vunpack.c.l.b16 %v77
    %v100 = vunpack.c.h.b16 %v77
    %v101 = vunpack.c.l.b16 %v78
    %v102 = vunpack.c.h.b16 %v78
    %v103 = vpack.c.b16 %v97, %v95
    %v104 = vpack.c.b16 %v98, %v96
    %v105 = vpack.c.b16 %v101, %v99
    %v106 = vpack.c.b16 %v102, %v100
    %vm109 = vcmask 252928
    %v111 = vsel %vm109, %v74, 0
    %vm113 = vcmask 1046528
    %vm114 = vcmask 1047552
    %v115 = vsel %vm113, 4294967295, 65535
    %v116 = vsel %vm114, %v115, 0
    %v118 = vand.u32 %v105, %v116
    %v121 = vand.u32 %v106, %v116
    %123 = vmatprep.subr.bf16.mxu0 %v104
    %124 = vmatpush1.bf16.msra.mxu0 %v103
    %125 = vmatprep.subr.bf16.mxu0 %v121
    %126 = vmatpush1.bf16.msra.mxu0 %v118
    %127 = vmatprep.subr.bf16.mxu0 0
    %128 = vmatpush1.bf16.msra.mxu0 0
    %129 = vmatprep.subr.bf16.mxu0 0
    %130 = vmatpush1.bf16.msra.mxu0 0
    %131 = vmatprep.subr.bf16.mxu0 0
    %132 = vmatpush1.bf16.msra.mxu0 0
    %133 = vmatprep.subr.bf16.mxu0 0
    %134 = vmatpush1.bf16.msra.mxu0 0
    %135 = vmatprep.subr.bf16.mxu0 0
    %136 = vmatpush1.bf16.msra.mxu0 0
    %137 = vmatprep.subr.bf16.mxu0 0
    %138 = vmatpush1.bf16.msra.mxu0 0
    %139 = vmatprep.subr.bf16.mxu0 0
    %140 = vmatpush1.bf16.msra.mxu0 0
    %141 = vmatprep.subr.bf16.mxu0 0
    %142 = vmatpush1.bf16.msra.mxu0 0
    %143 = vmatprep.subr.bf16.mxu0 0
    %144 = vmatpush1.bf16.msra.mxu0 0
    %145 = vmatprep.subr.bf16.mxu0 0
    %146 = vmatpush1.bf16.msra.mxu0 0
    %147 = vmatprep.subr.bf16.mxu0 0
    %148 = vmatpush1.bf16.msra.mxu0 0
    %149 = vmatprep.subr.bf16.mxu0 0
    %150 = vmatpush1.bf16.msra.mxu0 0
    %151 = vmatprep.subr.bf16.mxu0 0
    %152 = vmatpush1.bf16.msra.mxu0 0
    %153 = vmatprep.subr.bf16.mxu0 0
    %154 = vmatpush1.bf16.msra.mxu0 0
    %155 = vmatprep.mubr.bf16.mxu0 0
    %156 = vmatmul.mubr.bf16.gmra.mrb[0].mxu0 %v111
    %v157 = vpop.f32.mrb[0].mxu0
    %v158 = vadd.f32 %v84, %v157
    %v159 = vpop.f32.mrb[0].mxu0
    %v160 = vadd.f32 %v88, %v159
    %v161 = vpop.f32.mrb[0].mxu0
    %v162 = vpop.f32.mrb[0].mxu0
    %163 = vdwg.mxu0
    %v164 = vmax.f32 %v158, 0.0
    %v165 = vmax.f32 %v160, 0.0
    %v166 = vpack.c.bf16 %v164, %v164
    %v167 = vpack.c.bf16 %v165, %v165
    %v168 = vld [vmem:[#allocation7] sm:$0xff]
    %v169 = vld [vmem:[#allocation7 + $0x8] sm:$0xff]
    %v170 = vld [vmem:[#allocation7 + $0x10] sm:$0xff]
    %v171 = vld [vmem:[#allocation7 + $0x18] sm:$0xff]
    %v172 = vld [vmem:[#allocation7 + $0x20] sm:$0xff]
    %v173 = vld [vmem:[#allocation7 + $0x28] sm:$0xff]
    %v174 = vld [vmem:[#allocation7 + $0x30] sm:$0xff]
    %v175 = vld [vmem:[#allocation7 + $0x38] sm:$0xff]
    %v176 = vld [vmem:[#allocation7 + $0x40] sm:$0xff]
    %v177 = vld [vmem:[#allocation7 + $0x48] sm:$0xf]
    %v178 = vld [vmem:[#allocation7 + $0x4c] sm:$0xff]
    %v179 = vld [vmem:[#allocation7 + $0x54] sm:$0xff]
    %v180 = vld [vmem:[#allocation7 + $0x5c] sm:$0xff]
    %v181 = vld [vmem:[#allocation7 + $0x64] sm:$0xff]
    %v182 = vld [vmem:[#allocation7 + $0x6c] sm:$0xff]
    %v183 = vld [vmem:[#allocation7 + $0x74] sm:$0xff]
    %v184 = vld [vmem:[#allocation7 + $0x7c] sm:$0xff]
    %v185 = vld [vmem:[#allocation7 + $0x84] sm:$0xff]
    %v186 = vld [vmem:[#allocation7 + $0x8c] sm:$0xff]
    %v187 = vld [vmem:[#allocation7 + $0x94] sm:$0xf]
    %v188 = vld [vmem:[#allocation7 + $0x98] sm:$0xff]
    %v189 = vld [vmem:[#allocation7 + $0xa0] sm:$0xff]
    %v190 = vld [vmem:[#allocation7 + $0xa8] sm:$0xff]
    %v191 = vld [vmem:[#allocation7 + $0xb0] sm:$0xff]
    %v192 = vld [vmem:[#allocation7 + $0xb8] sm:$0xff]
    %v193 = vld [vmem:[#allocation7 + $0xc0] sm:$0xff]
    %v194 = vld [vmem:[#allocation7 + $0xc8] sm:$0xff]
    %v195 = vld [vmem:[#allocation7 + $0xd0] sm:$0xff]
    %v196 = vld [vmem:[#allocation7 + $0xd8] sm:$0xff]
    %v197 = vld [vmem:[#allocation7 + $0xe0] sm:$0xf]
    %v198 = vld [vmem:[#allocation7 + $0xe4] sm:$0xff]
    %v199 = vld [vmem:[#allocation7 + $0xec] sm:$0xff]
    %v200 = vld [vmem:[#allocation7 + $0xf4] sm:$0xff]
    %v201 = vld [vmem:[#allocation7 + $0xfc] sm:$0xff]
    %v202 = vld [vmem:[#allocation7 + $0x104] sm:$0xff]
    %v203 = vld [vmem:[#allocation7 + $0x10c] sm:$0xff]
    %v204 = vld [vmem:[#allocation7 + $0x114] sm:$0xff]
    %v205 = vld [vmem:[#allocation7 + $0x11c] sm:$0xff]
    %v206 = vld [vmem:[#allocation7 + $0x124] sm:$0xff]
    %v207 = vld [vmem:[#allocation7 + $0x12c] sm:$0xf]
    %v208 = vld [vmem:[#allocation7 + $0x130] sm:$0xff]
    %v209 = vld [vmem:[#allocation7 + $0x138] sm:$0xff]
    %v210 = vld [vmem:[#allocation7 + $0x140] sm:$0xff]
    %v211 = vld [vmem:[#allocation7 + $0x148] sm:$0xff]
    %v212 = vld [vmem:[#allocation7 + $0x150] sm:$0xff]
    %v213 = vld [vmem:[#allocation7 + $0x158] sm:$0xff]
    %v214 = vld [vmem:[#allocation7 + $0x160] sm:$0xff]
    %v215 = vld [vmem:[#allocation7 + $0x168] sm:$0xff]
    %v216 = vld [vmem:[#allocation7 + $0x170] sm:$0xff]
    %v217 = vld [vmem:[#allocation7 + $0x178] sm:$0xf]
    %v218 = vld [vmem:[#allocation7 + $0x17c] sm:$0xff]
    %v219 = vld [vmem:[#allocation7 + $0x184] sm:$0xff]
    %v220 = vld [vmem:[#allocation7 + $0x18c] sm:$0xff]
    %v221 = vld [vmem:[#allocation7 + $0x194] sm:$0xff]
    %v222 = vld [vmem:[#allocation7 + $0x19c] sm:$0xff]
    %v223 = vld [vmem:[#allocation7 + $0x1a4] sm:$0xff]
    %v224 = vld [vmem:[#allocation7 + $0x1ac] sm:$0xff]
    %v225 = vld [vmem:[#allocation7 + $0x1b4] sm:$0xff]
    %v226 = vld [vmem:[#allocation7 + $0x1bc] sm:$0xff]
    %v227 = vld [vmem:[#allocation7 + $0x1c4] sm:$0xf]
    %v228 = vld [vmem:[#allocation7 + $0x1c8] sm:$0xff]
    %v229 = vld [vmem:[#allocation7 + $0x1d0] sm:$0xff]
    %v230 = vld [vmem:[#allocation7 + $0x1d8] sm:$0xff]
    %v231 = vld [vmem:[#allocation7 + $0x1e0] sm:$0xff]
    %v232 = vld [vmem:[#allocation7 + $0x1e8] sm:$0xff]
    %v233 = vld [vmem:[#allocation7 + $0x1f0] sm:$0xff]
    %v234 = vld [vmem:[#allocation7 + $0x1f8] sm:$0xff]
    %v235 = vld [vmem:[#allocation7 + $0x200] sm:$0xff]
    %v236 = vld [vmem:[#allocation7 + $0x208] sm:$0xff]
    %v237 = vld [vmem:[#allocation7 + $0x210] sm:$0xf]
    %v238 = vld [vmem:[#allocation7 + $0x214] sm:$0xff]
    %v239 = vld [vmem:[#allocation7 + $0x21c] sm:$0xff]
    %v240 = vld [vmem:[#allocation7 + $0x224] sm:$0xff]
    %v241 = vld [vmem:[#allocation7 + $0x22c] sm:$0xff]
    %v242 = vld [vmem:[#allocation7 + $0x234] sm:$0xff]
    %v243 = vld [vmem:[#allocation7 + $0x23c] sm:$0xff]
    %v244 = vld [vmem:[#allocation7 + $0x244] sm:$0xff]
    %v245 = vld [vmem:[#allocation7 + $0x24c] sm:$0xff]
    %v246 = vld [vmem:[#allocation7 + $0x254] sm:$0xff]
    %v247 = vld [vmem:[#allocation7 + $0x25c] sm:$0xf]
    %v248 = vld [vmem:[#allocation7 + $0x260] sm:$0xff]
    %v249 = vld [vmem:[#allocation7 + $0x268] sm:$0xff]
    %v250 = vld [vmem:[#allocation7 + $0x270] sm:$0xff]
    %v251 = vld [vmem:[#allocation7 + $0x278] sm:$0xff]
    %v252 = vld [vmem:[#allocation7 + $0x280] sm:$0xff]
    %v253 = vld [vmem:[#allocation7 + $0x288] sm:$0xff]
    %v254 = vld [vmem:[#allocation7 + $0x290] sm:$0xff]
    %v255 = vld [vmem:[#allocation7 + $0x298] sm:$0xff]
    %v256 = vld [vmem:[#allocation7 + $0x2a0] sm:$0xff]
    %v257 = vld [vmem:[#allocation7 + $0x2a8] sm:$0xf]
    %v258 = vld [vmem:[#allocation7 + $0x2ac] sm:$0xff]
    %v259 = vld [vmem:[#allocation7 + $0x2b4] sm:$0xff]
    %v260 = vld [vmem:[#allocation7 + $0x2bc] sm:$0xff]
    %v261 = vld [vmem:[#allocation7 + $0x2c4] sm:$0xff]
    %v262 = vld [vmem:[#allocation7 + $0x2cc] sm:$0xff]
    %v263 = vld [vmem:[#allocation7 + $0x2d4] sm:$0xff]
    %v264 = vld [vmem:[#allocation7 + $0x2dc] sm:$0xff]
    %v265 = vld [vmem:[#allocation7 + $0x2e4] sm:$0xff]
    %v266 = vld [vmem:[#allocation7 + $0x2ec] sm:$0xff]
    %v267 = vld [vmem:[#allocation7 + $0x2f4] sm:$0xf]
    %v268 = vld [vmem:[#allocation7 + $0x2f8] sm:$0xff]
    %v269 = vld [vmem:[#allocation7 + $0x300] sm:$0xff]
    %v270 = vld [vmem:[#allocation7 + $0x308] sm:$0xff]
    %v271 = vld [vmem:[#allocation7 + $0x310] sm:$0xff]
    %v272 = vld [vmem:[#allocation7 + $0x318] sm:$0xff]
    %v273 = vld [vmem:[#allocation7 + $0x320] sm:$0xff]
    %v274 = vld [vmem:[#allocation7 + $0x328] sm:$0xff]
    %v275 = vld [vmem:[#allocation7 + $0x330] sm:$0xff]
    %v276 = vld [vmem:[#allocation7 + $0x338] sm:$0xff]
    %v277 = vld [vmem:[#allocation7 + $0x340] sm:$0xf]
    %v278 = vld [vmem:[#allocation7 + $0x344] sm:$0xff]
    %v279 = vld [vmem:[#allocation7 + $0x34c] sm:$0xff]
    %v280 = vld [vmem:[#allocation7 + $0x354] sm:$0xff]
    %v281 = vld [vmem:[#allocation7 + $0x35c] sm:$0xff]
    %v282 = vld [vmem:[#allocation7 + $0x364] sm:$0xff]
    %v283 = vld [vmem:[#allocation7 + $0x36c] sm:$0xff]
    %v284 = vld [vmem:[#allocation7 + $0x374] sm:$0xff]
    %v285 = vld [vmem:[#allocation7 + $0x37c] sm:$0xff]
    %v286 = vld [vmem:[#allocation7 + $0x384] sm:$0xff]
    %v287 = vld [vmem:[#allocation7 + $0x38c] sm:$0xf]
    %v288 = vld [vmem:[#allocation7 + $0x390] sm:$0xff]
    %v289 = vld [vmem:[#allocation7 + $0x398] sm:$0xff]
    %v290 = vld [vmem:[#allocation7 + $0x3a0] sm:$0xff]
    %v291 = vld [vmem:[#allocation7 + $0x3a8] sm:$0xff]
    %v292 = vld [vmem:[#allocation7 + $0x3b0] sm:$0xff]
    %v293 = vld [vmem:[#allocation7 + $0x3b8] sm:$0xff]
    %v294 = vld [vmem:[#allocation7 + $0x3c0] sm:$0xff]
    %v295 = vld [vmem:[#allocation7 + $0x3c8] sm:$0xff]
    %v296 = vld [vmem:[#allocation7 + $0x3d0] sm:$0xff]
    %v297 = vld [vmem:[#allocation7 + $0x3d8] sm:$0xf]
    %v298 = vld [vmem:[#allocation7 + $0x3dc] sm:$0xff]
    %v299 = vld [vmem:[#allocation7 + $0x3e4] sm:$0xff]
    %v300 = vld [vmem:[#allocation7 + $0x3ec] sm:$0xff]
    %v301 = vld [vmem:[#allocation7 + $0x3f4] sm:$0xff]
    %v302 = vld [vmem:[#allocation7 + $0x3fc] sm:$0xff]
    %v303 = vld [vmem:[#allocation7 + $0x404] sm:$0xff]
    %v304 = vld [vmem:[#allocation7 + $0x40c] sm:$0xff]
    %v305 = vld [vmem:[#allocation7 + $0x414] sm:$0xff]
    %v306 = vld [vmem:[#allocation7 + $0x41c] sm:$0xff]
    %v307 = vld [vmem:[#allocation7 + $0x424] sm:$0xf]
    %v308 = vld [vmem:[#allocation7 + $0x428] sm:$0xff]
    %v309 = vld [vmem:[#allocation7 + $0x430] sm:$0xff]
    %v310 = vld [vmem:[#allocation7 + $0x438] sm:$0xff]
    %v311 = vld [vmem:[#allocation7 + $0x440] sm:$0xff]
    %v312 = vld [vmem:[#allocation7 + $0x448] sm:$0xff]
    %v313 = vld [vmem:[#allocation7 + $0x450] sm:$0xff]
    %v314 = vld [vmem:[#allocation7 + $0x458] sm:$0xff]
    %v315 = vld [vmem:[#allocation7 + $0x460] sm:$0xff]
    %v316 = vld [vmem:[#allocation7 + $0x468] sm:$0xff]
    %v317 = vld [vmem:[#allocation7 + $0x470] sm:$0xf]
    %v318 = vld [vmem:[#allocation7 + $0x474] sm:$0xff]
    %v319 = vld [vmem:[#allocation7 + $0x47c] sm:$0xff]
    %v320 = vld [vmem:[#allocation7 + $0x484] sm:$0xff]
    %v321 = vld [vmem:[#allocation7 + $0x48c] sm:$0xff]
    %v322 = vld [vmem:[#allocation7 + $0x494] sm:$0xff]
    %v323 = vld [vmem:[#allocation7 + $0x49c] sm:$0xff]
    %v324 = vld [vmem:[#allocation7 + $0x4a4] sm:$0xff]
    %v325 = vld [vmem:[#allocation7 + $0x4ac] sm:$0xff]
    %v326 = vld [vmem:[#allocation7 + $0x4b4] sm:$0xff]
    %v327 = vld [vmem:[#allocation7 + $0x4bc] sm:$0xf]
    %v328 = vld [vmem:[#allocation7 + $0x4c0] sm:$0xff]
    %v329 = vld [vmem:[#allocation7 + $0x4c8] sm:$0xff]
    %v330 = vld [vmem:[#allocation7 + $0x4d0] sm:$0xff]
    %v331 = vld [vmem:[#allocation7 + $0x4d8] sm:$0xff]
    %v332 = vld [vmem:[#allocation7 + $0x4e0] sm:$0xff]
    %v333 = vld [vmem:[#allocation7 + $0x4e8] sm:$0xff]
    %v334 = vld [vmem:[#allocation7 + $0x4f0] sm:$0xff]
    %v335 = vld [vmem:[#allocation7 + $0x4f8] sm:$0xff]
    %v336 = vld [vmem:[#allocation7 + $0x500] sm:$0xff]
    %v337 = vld [vmem:[#allocation7 + $0x508] sm:$0xf]
    %v338 = vld [vmem:[#allocation7 + $0x50c] sm:$0xff]
    %v339 = vld [vmem:[#allocation7 + $0x514] sm:$0xff]
    %v340 = vld [vmem:[#allocation7 + $0x51c] sm:$0xff]
    %v341 = vld [vmem:[#allocation7 + $0x524] sm:$0xff]
    %v342 = vld [vmem:[#allocation7 + $0x52c] sm:$0xff]
    %v343 = vld [vmem:[#allocation7 + $0x534] sm:$0xff]
    %v344 = vld [vmem:[#allocation7 + $0x53c] sm:$0xff]
    %v345 = vld [vmem:[#allocation7 + $0x544] sm:$0xff]
    %v346 = vld [vmem:[#allocation7 + $0x54c] sm:$0xff]
    %v347 = vld [vmem:[#allocation7 + $0x554] sm:$0xf]
    %v348 = vld [vmem:[#allocation7 + $0x558] sm:$0xff]
    %v349 = vld [vmem:[#allocation7 + $0x560] sm:$0xff]
    %v350 = vld [vmem:[#allocation7 + $0x568] sm:$0xff]
    %v351 = vld [vmem:[#allocation7 + $0x570] sm:$0xff]
    %v352 = vld [vmem:[#allocation7 + $0x578] sm:$0xff]
    %v353 = vld [vmem:[#allocation7 + $0x580] sm:$0xff]
    %v354 = vld [vmem:[#allocation7 + $0x588] sm:$0xff]
    %v355 = vld [vmem:[#allocation7 + $0x590] sm:$0xff]
    %v356 = vld [vmem:[#allocation7 + $0x598] sm:$0xff]
    %v357 = vld [vmem:[#allocation7 + $0x5a0] sm:$0xf]
    %v358 = vld [vmem:[#allocation7 + $0x5a4] sm:$0xff]
    %v359 = vld [vmem:[#allocation7 + $0x5ac] sm:$0xff]
    %v360 = vld [vmem:[#allocation7 + $0x5b4] sm:$0xff]
    %v361 = vld [vmem:[#allocation7 + $0x5bc] sm:$0xff]
    %v362 = vld [vmem:[#allocation7 + $0x5c4] sm:$0xff]
    %v363 = vld [vmem:[#allocation7 + $0x5cc] sm:$0xff]
    %v364 = vld [vmem:[#allocation7 + $0x5d4] sm:$0xff]
    %v365 = vld [vmem:[#allocation7 + $0x5dc] sm:$0xff]
    %v366 = vld [vmem:[#allocation7 + $0x5e4] sm:$0xff]
    %v367 = vld [vmem:[#allocation7 + $0x5ec] sm:$0xf]
    %v368 = vld [vmem:[#allocation7 + $0x5f0] sm:$0xff]
    %v369 = vld [vmem:[#allocation7 + $0x5f8] sm:$0xff]
    %v370 = vld [vmem:[#allocation7 + $0x600] sm:$0xff]
    %v371 = vld [vmem:[#allocation7 + $0x608] sm:$0xff]
    %v372 = vld [vmem:[#allocation7 + $0x610] sm:$0xff]
    %v373 = vld [vmem:[#allocation7 + $0x618] sm:$0xff]
    %v374 = vld [vmem:[#allocation7 + $0x620] sm:$0xff]
    %v375 = vld [vmem:[#allocation7 + $0x628] sm:$0xff]
    %v376 = vld [vmem:[#allocation7 + $0x630] sm:$0xff]
    %v377 = vld [vmem:[#allocation7 + $0x638] sm:$0xf]
    %v378 = vld [vmem:[#allocation7 + $0x63c] sm:$0xff]
    %v379 = vld [vmem:[#allocation7 + $0x644] sm:$0xff]
    %v380 = vld [vmem:[#allocation7 + $0x64c] sm:$0xff]
    %v381 = vld [vmem:[#allocation7 + $0x654] sm:$0xff]
    %v382 = vld [vmem:[#allocation7 + $0x65c] sm:$0xff]
    %v383 = vld [vmem:[#allocation7 + $0x664] sm:$0xff]
    %v384 = vld [vmem:[#allocation7 + $0x66c] sm:$0xff]
    %v385 = vld [vmem:[#allocation7 + $0x674] sm:$0xff]
    %v386 = vld [vmem:[#allocation7 + $0x67c] sm:$0xff]
    %v387 = vld [vmem:[#allocation7 + $0x684] sm:$0xf]
    %v388 = vld [vmem:[#allocation8] sm:$0xff]
    %v389 = vld [vmem:[#allocation8 + $0x8] sm:$0xff]
    %v390 = vld [vmem:[#allocation8 + $0x10] sm:$0x7]
    %v394 = vlaneseq
    %v395 = vshrl.u32 %v394, 7
    %v396 = vsub.s32 0, %v395
    %v397 = vrot.slane %v388, %v396
    %v398 = vlaneseq
    %v399 = vshrl.u32 %v398, 7
    %v400 = vsub.s32 1, %v399
    %v401 = vrot.slane %v388, %v400
    %v402 = vlaneseq
    %v403 = vshrl.u32 %v402, 7
    %v404 = vsub.s32 2, %v403
    %v405 = vrot.slane %v388, %v404
    %v406 = vlaneseq
    %v407 = vshrl.u32 %v406, 7
    %v408 = vsub.s32 3, %v407
    %v409 = vrot.slane %v388, %v408
    %v410 = vlaneseq
    %v411 = vshrl.u32 %v410, 7
    %v412 = vsub.s32 4, %v411
    %v413 = vrot.slane %v388, %v412
    %v414 = vlaneseq
    %v415 = vshrl.u32 %v414, 7
    %v416 = vsub.s32 5, %v415
    %v417 = vrot.slane %v388, %v416
    %v418 = vlaneseq
    %v419 = vshrl.u32 %v418, 7
    %v420 = vsub.s32 6, %v419
    %v421 = vrot.slane %v388, %v420
    %v422 = vlaneseq
    %v423 = vshrl.u32 %v422, 7
    %v424 = vsub.s32 7, %v423
    %v425 = vrot.slane %v388, %v424
    %v426 = vlaneseq
    %v427 = vshrl.u32 %v426, 7
    %v428 = vsub.s32 0, %v427
    %v429 = vrot.slane %v389, %v428
    %v430 = vlaneseq
    %v431 = vshrl.u32 %v430, 7
    %v432 = vsub.s32 1, %v431
    %v433 = vrot.slane %v389, %v432
    %v434 = vlaneseq
    %v435 = vshrl.u32 %v434, 7
    %v436 = vsub.s32 2, %v435
    %v437 = vrot.slane %v389, %v436
    %v438 = vlaneseq
    %v439 = vshrl.u32 %v438, 7
    %v440 = vsub.s32 3, %v439
    %v441 = vrot.slane %v389, %v440
    %v442 = vlaneseq
    %v443 = vshrl.u32 %v442, 7
    %v444 = vsub.s32 4, %v443
    %v445 = vrot.slane %v389, %v444
    %v446 = vlaneseq
    %v447 = vshrl.u32 %v446, 7
    %v448 = vsub.s32 5, %v447
    %v449 = vrot.slane %v389, %v448
    %v450 = vlaneseq
    %v451 = vshrl.u32 %v450, 7
    %v452 = vsub.s32 6, %v451
    %v453 = vrot.slane %v389, %v452
    %v454 = vlaneseq
    %v455 = vshrl.u32 %v454, 7
    %v456 = vsub.s32 7, %v455
    %v457 = vrot.slane %v389, %v456
    %v458 = vlaneseq
    %v459 = vshrl.u32 %v458, 7
    %v460 = vsub.s32 0, %v459
    %v461 = vrot.slane %v390, %v460
    %v462 = vlaneseq
    %v463 = vshrl.u32 %v462, 7
    %v464 = vsub.s32 1, %v463
    %v465 = vrot.slane %v390, %v464
    %v466 = vlaneseq
    %v467 = vshrl.u32 %v466, 7
    %v468 = vsub.s32 2, %v467
    %v469 = vrot.slane %v390, %v468
    %v709 = vunpack.c.l.b16 %v168
    %v710 = vunpack.c.h.b16 %v168
    %v711 = vunpack.c.l.b16 %v169
    %v712 = vunpack.c.h.b16 %v169
    %v713 = vunpack.c.l.b16 %v170
    %v714 = vunpack.c.h.b16 %v170
    %v715 = vunpack.c.l.b16 %v171
    %v716 = vunpack.c.h.b16 %v171
    %v717 = vunpack.c.l.b16 %v172
    %v718 = vunpack.c.h.b16 %v172
    %v719 = vunpack.c.l.b16 %v173
    %v720 = vunpack.c.h.b16 %v173
    %v721 = vunpack.c.l.b16 %v174
    %v722 = vunpack.c.h.b16 %v174
    %v723 = vunpack.c.l.b16 %v175
    %v724 = vunpack.c.h.b16 %v175
    %v725 = vunpack.c.l.b16 %v176
    %v726 = vunpack.c.h.b16 %v176
    %v727 = vunpack.c.l.b16 %v177
    %v728 = vunpack.c.l.b16 %v178
    %v729 = vunpack.c.h.b16 %v178
    %v730 = vunpack.c.l.b16 %v179
    %v731 = vunpack.c.h.b16 %v179
    %v732 = vunpack.c.l.b16 %v180
    %v733 = vunpack.c.h.b16 %v180
    %v734 = vunpack.c.l.b16 %v181
    %v735 = vunpack.c.h.b16 %v181
    %v736 = vunpack.c.l.b16 %v182
    %v737 = vunpack.c.h.b16 %v182
    %v738 = vunpack.c.l.b16 %v183
    %v739 = vunpack.c.h.b16 %v183
    %v740 = vunpack.c.l.b16 %v184
    %v741 = vunpack.c.h.b16 %v184
    %v742 = vunpack.c.l.b16 %v185
    %v743 = vunpack.c.h.b16 %v185
    %v744 = vunpack.c.l.b16 %v186
    %v745 = vunpack.c.h.b16 %v186
    %v746 = vunpack.c.l.b16 %v187
    %v747 = vunpack.c.l.b16 %v188
    %v748 = vunpack.c.h.b16 %v188
    %v749 = vunpack.c.l.b16 %v189
    %v750 = vunpack.c.h.b16 %v189
    %v751 = vunpack.c.l.b16 %v190
    %v752 = vunpack.c.h.b16 %v190
    %v753 = vunpack.c.l.b16 %v191
    %v754 = vunpack.c.h.b16 %v191
    %v755 = vunpack.c.l.b16 %v192
    %v756 = vunpack.c.h.b16 %v192
    %v757 = vunpack.c.l.b16 %v193
    %v758 = vunpack.c.h.b16 %v193
    %v759 = vunpack.c.l.b16 %v194
    %v760 = vunpack.c.h.b16 %v194
    %v761 = vunpack.c.l.b16 %v195
    %v762 = vunpack.c.h.b16 %v195
    %v763 = vunpack.c.l.b16 %v196
    %v764 = vunpack.c.h.b16 %v196
    %v765 = vunpack.c.l.b16 %v197
    %v766 = vunpack.c.l.b16 %v198
    %v767 = vunpack.c.h.b16 %v198
    %v768 = vunpack.c.l.b16 %v199
    %v769 = vunpack.c.h.b16 %v199
    %v770 = vunpack.c.l.b16 %v200
    %v771 = vunpack.c.h.b16 %v200
    %v772 = vunpack.c.l.b16 %v201
    %v773 = vunpack.c.h.b16 %v201
    %v774 = vunpack.c.l.b16 %v202
    %v775 = vunpack.c.h.b16 %v202
    %v776 = vunpack.c.l.b16 %v203
    %v777 = vunpack.c.h.b16 %v203
    %v778 = vunpack.c.l.b16 %v204
    %v779 = vunpack.c.h.b16 %v204
    %v780 = vunpack.c.l.b16 %v205
    %v781 = vunpack.c.h.b16 %v205
    %v782 = vunpack.c.l.b16 %v206
    %v783 = vunpack.c.h.b16 %v206
    %v784 = vunpack.c.l.b16 %v207
    %v785 = vunpack.c.l.b16 %v208
    %v786 = vunpack.c.h.b16 %v208
    %v787 = vunpack.c.l.b16 %v209
    %v788 = vunpack.c.h.b16 %v209
    %v789 = vunpack.c.l.b16 %v210
    %v790 = vunpack.c.h.b16 %v210
    %v791 = vunpack.c.l.b16 %v211
    %v792 = vunpack.c.h.b16 %v211
    %v793 = vunpack.c.l.b16 %v212
    %v794 = vunpack.c.h.b16 %v212
    %v795 = vunpack.c.l.b16 %v213
    %v796 = vunpack.c.h.b16 %v213
    %v797 = vunpack.c.l.b16 %v214
    %v798 = vunpack.c.h.b16 %v214
    %v799 = vunpack.c.l.b16 %v215
    %v800 = vunpack.c.h.b16 %v215
    %v801 = vunpack.c.l.b16 %v216
    %v802 = vunpack.c.h.b16 %v216
    %v803 = vunpack.c.l.b16 %v217
    %v804 = vunpack.c.l.b16 %v218
    %v805 = vunpack.c.h.b16 %v218
    %v806 = vunpack.c.l.b16 %v219
    %v807 = vunpack.c.h.b16 %v219
    %v808 = vunpack.c.l.b16 %v220
    %v809 = vunpack.c.h.b16 %v220
    %v810 = vunpack.c.l.b16 %v221
    %v811 = vunpack.c.h.b16 %v221
    %v812 = vunpack.c.l.b16 %v222
    %v813 = vunpack.c.h.b16 %v222
    %v814 = vunpack.c.l.b16 %v223
    %v815 = vunpack.c.h.b16 %v223
    %v816 = vunpack.c.l.b16 %v224
    %v817 = vunpack.c.h.b16 %v224
    %v818 = vunpack.c.l.b16 %v225
    %v819 = vunpack.c.h.b16 %v225
    %v820 = vunpack.c.l.b16 %v226
    %v821 = vunpack.c.h.b16 %v226
    %v822 = vunpack.c.l.b16 %v227
    %v823 = vunpack.c.l.b16 %v228
    %v824 = vunpack.c.h.b16 %v228
    %v825 = vunpack.c.l.b16 %v229
    %v826 = vunpack.c.h.b16 %v229
    %v827 = vunpack.c.l.b16 %v230
    %v828 = vunpack.c.h.b16 %v230
    %v829 = vunpack.c.l.b16 %v231
    %v830 = vunpack.c.h.b16 %v231
    %v831 = vunpack.c.l.b16 %v232
    %v832 = vunpack.c.h.b16 %v232
    %v833 = vunpack.c.l.b16 %v233
    %v834 = vunpack.c.h.b16 %v233
    %v835 = vunpack.c.l.b16 %v234
    %v836 = vunpack.c.h.b16 %v234
    %v837 = vunpack.c.l.b16 %v235
    %v838 = vunpack.c.h.b16 %v235
    %v839 = vunpack.c.l.b16 %v236
    %v840 = vunpack.c.h.b16 %v236
    %v841 = vunpack.c.l.b16 %v237
    %v842 = vunpack.c.l.b16 %v238
    %v843 = vunpack.c.h.b16 %v238
    %v844 = vunpack.c.l.b16 %v239
    %v845 = vunpack.c.h.b16 %v239
    %v846 = vunpack.c.l.b16 %v240
    %v847 = vunpack.c.h.b16 %v240
    %v848 = vunpack.c.l.b16 %v241
    %v849 = vunpack.c.h.b16 %v241
    %v850 = vunpack.c.l.b16 %v242
    %v851 = vunpack.c.h.b16 %v242
    %v852 = vunpack.c.l.b16 %v243
    %v853 = vunpack.c.h.b16 %v243
    %v854 = vunpack.c.l.b16 %v244
    %v855 = vunpack.c.h.b16 %v244
    %v856 = vunpack.c.l.b16 %v245
    %v857 = vunpack.c.h.b16 %v245
    %v858 = vunpack.c.l.b16 %v246
    %v859 = vunpack.c.h.b16 %v246
    %v860 = vunpack.c.l.b16 %v247
    %v861 = vunpack.c.l.b16 %v248
    %v862 = vunpack.c.h.b16 %v248
    %v863 = vunpack.c.l.b16 %v249
    %v864 = vunpack.c.h.b16 %v249
    %v865 = vunpack.c.l.b16 %v250
    %v866 = vunpack.c.h.b16 %v250
    %v867 = vunpack.c.l.b16 %v251
    %v868 = vunpack.c.h.b16 %v251
    %v869 = vunpack.c.l.b16 %v252
    %v870 = vunpack.c.h.b16 %v252
    %v871 = vunpack.c.l.b16 %v253
    %v872 = vunpack.c.h.b16 %v253
    %v873 = vunpack.c.l.b16 %v254
    %v874 = vunpack.c.h.b16 %v254
    %v875 = vunpack.c.l.b16 %v255
    %v876 = vunpack.c.h.b16 %v255
    %v877 = vunpack.c.l.b16 %v256
    %v878 = vunpack.c.h.b16 %v256
    %v879 = vunpack.c.l.b16 %v257
    %v880 = vunpack.c.l.b16 %v258
    %v881 = vunpack.c.h.b16 %v258
    %v882 = vunpack.c.l.b16 %v259
    %v883 = vunpack.c.h.b16 %v259
    %v884 = vunpack.c.l.b16 %v260
    %v885 = vunpack.c.h.b16 %v260
    %v886 = vunpack.c.l.b16 %v261
    %v887 = vunpack.c.h.b16 %v261
    %v888 = vunpack.c.l.b16 %v262
    %v889 = vunpack.c.h.b16 %v262
    %v890 = vunpack.c.l.b16 %v263
    %v891 = vunpack.c.h.b16 %v263
    %v892 = vunpack.c.l.b16 %v264
    %v893 = vunpack.c.h.b16 %v264
    %v894 = vunpack.c.l.b16 %v265
    %v895 = vunpack.c.h.b16 %v265
    %v896 = vunpack.c.l.b16 %v266
    %v897 = vunpack.c.h.b16 %v266
    %v898 = vunpack.c.l.b16 %v267
    %v899 = vunpack.c.l.b16 %v268
    %v900 = vunpack.c.h.b16 %v268
    %v901 = vunpack.c.l.b16 %v269
    %v902 = vunpack.c.h.b16 %v269
    %v903 = vunpack.c.l.b16 %v270
    %v904 = vunpack.c.h.b16 %v270
    %v905 = vunpack.c.l.b16 %v271
    %v906 = vunpack.c.h.b16 %v271
    %v907 = vunpack.c.l.b16 %v272
    %v908 = vunpack.c.h.b16 %v272
    %v909 = vunpack.c.l.b16 %v273
    %v910 = vunpack.c.h.b16 %v273
    %v911 = vunpack.c.l.b16 %v274
    %v912 = vunpack.c.h.b16 %v274
    %v913 = vunpack.c.l.b16 %v275
    %v914 = vunpack.c.h.b16 %v275
    %v915 = vunpack.c.l.b16 %v276
    %v916 = vunpack.c.h.b16 %v276
    %v917 = vunpack.c.l.b16 %v277
    %v918 = vunpack.c.l.b16 %v278
    %v919 = vunpack.c.h.b16 %v278
    %v920 = vunpack.c.l.b16 %v279
    %v921 = vunpack.c.h.b16 %v279
    %v922 = vunpack.c.l.b16 %v280
    %v923 = vunpack.c.h.b16 %v280
    %v924 = vunpack.c.l.b16 %v281
    %v925 = vunpack.c.h.b16 %v281
    %v926 = vunpack.c.l.b16 %v282
    %v927 = vunpack.c.h.b16 %v282
    %v928 = vunpack.c.l.b16 %v283
    %v929 = vunpack.c.h.b16 %v283
    %v930 = vunpack.c.l.b16 %v284
    %v931 = vunpack.c.h.b16 %v284
    %v932 = vunpack.c.l.b16 %v285
    %v933 = vunpack.c.h.b16 %v285
    %v934 = vunpack.c.l.b16 %v286
    %v935 = vunpack.c.h.b16 %v286
    %v936 = vunpack.c.l.b16 %v287
    %v937 = vunpack.c.l.b16 %v288
    %v938 = vunpack.c.h.b16 %v288
    %v939 = vunpack.c.l.b16 %v289
    %v940 = vunpack.c.h.b16 %v289
    %v941 = vunpack.c.l.b16 %v290
    %v942 = vunpack.c.h.b16 %v290
    %v943 = vunpack.c.l.b16 %v291
    %v944 = vunpack.c.h.b16 %v291
    %v945 = vunpack.c.l.b16 %v292
    %v946 = vunpack.c.h.b16 %v292
    %v947 = vunpack.c.l.b16 %v293
    %v948 = vunpack.c.h.b16 %v293
    %v949 = vunpack.c.l.b16 %v294
    %v950 = vunpack.c.h.b16 %v294
    %v951 = vunpack.c.l.b16 %v295
    %v952 = vunpack.c.h.b16 %v295
    %v953 = vunpack.c.l.b16 %v296
    %v954 = vunpack.c.h.b16 %v296
    %v955 = vunpack.c.l.b16 %v297
    %v956 = vunpack.c.l.b16 %v298
    %v957 = vunpack.c.h.b16 %v298
    %v958 = vunpack.c.l.b16 %v299
    %v959 = vunpack.c.h.b16 %v299
    %v960 = vunpack.c.l.b16 %v300
    %v961 = vunpack.c.h.b16 %v300
    %v962 = vunpack.c.l.b16 %v301
    %v963 = vunpack.c.h.b16 %v301
    %v964 = vunpack.c.l.b16 %v302
    %v965 = vunpack.c.h.b16 %v302
    %v966 = vunpack.c.l.b16 %v303
    %v967 = vunpack.c.h.b16 %v303
    %v968 = vunpack.c.l.b16 %v304
    %v969 = vunpack.c.h.b16 %v304
    %v970 = vunpack.c.l.b16 %v305
    %v971 = vunpack.c.h.b16 %v305
    %v972 = vunpack.c.l.b16 %v306
    %v973 = vunpack.c.h.b16 %v306
    %v974 = vunpack.c.l.b16 %v307
    %v975 = vunpack.c.l.b16 %v308
    %v976 = vunpack.c.h.b16 %v308
    %v977 = vunpack.c.l.b16 %v309
    %v978 = vunpack.c.h.b16 %v309
    %v979 = vunpack.c.l.b16 %v310
    %v980 = vunpack.c.h.b16 %v310
    %v981 = vunpack.c.l.b16 %v311
    %v982 = vunpack.c.h.b16 %v311
    %v983 = vunpack.c.l.b16 %v312
    %v984 = vunpack.c.h.b16 %v312
    %v985 = vunpack.c.l.b16 %v313
    %v986 = vunpack.c.h.b16 %v313
    %v987 = vunpack.c.l.b16 %v314
    %v988 = vunpack.c.h.b16 %v314
    %v989 = vunpack.c.l.b16 %v315
    %v990 = vunpack.c.h.b16 %v315
    %v991 = vunpack.c.l.b16 %v316
    %v992 = vunpack.c.h.b16 %v316
    %v993 = vunpack.c.l.b16 %v317
    %v994 = vunpack.c.l.b16 %v318
    %v995 = vunpack.c.h.b16 %v318
    %v996 = vunpack.c.l.b16 %v319
    %v997 = vunpack.c.h.b16 %v319
    %v998 = vunpack.c.l.b16 %v320
    %v999 = vunpack.c.h.b16 %v320
    %v1000 = vunpack.c.l.b16 %v321
    %v1001 = vunpack.c.h.b16 %v321
    %v1002 = vunpack.c.l.b16 %v322
    %v1003 = vunpack.c.h.b16 %v322
    %v1004 = vunpack.c.l.b16 %v323
    %v1005 = vunpack.c.h.b16 %v323
    %v1006 = vunpack.c.l.b16 %v324
    %v1007 = vunpack.c.h.b16 %v324
    %v1008 = vunpack.c.l.b16 %v325
    %v1009 = vunpack.c.h.b16 %v325
    %v1010 = vunpack.c.l.b16 %v326
    %v1011 = vunpack.c.h.b16 %v326
    %v1012 = vunpack.c.l.b16 %v327
    %v1013 = vunpack.c.l.b16 %v328
    %v1014 = vunpack.c.h.b16 %v328
    %v1015 = vunpack.c.l.b16 %v329
    %v1016 = vunpack.c.h.b16 %v329
    %v1017 = vunpack.c.l.b16 %v330
    %v1018 = vunpack.c.h.b16 %v330
    %v1019 = vunpack.c.l.b16 %v331
    %v1020 = vunpack.c.h.b16 %v331
    %v1021 = vunpack.c.l.b16 %v332
    %v1022 = vunpack.c.h.b16 %v332
    %v1023 = vunpack.c.l.b16 %v333
    %v1024 = vunpack.c.h.b16 %v333
    %v1025 = vunpack.c.l.b16 %v334
    %v1026 = vunpack.c.h.b16 %v334
    %v1027 = vunpack.c.l.b16 %v335
    %v1028 = vunpack.c.h.b16 %v335
    %v1029 = vunpack.c.l.b16 %v336
    %v1030 = vunpack.c.h.b16 %v336
    %v1031 = vunpack.c.l.b16 %v337
    %v1032 = vunpack.c.l.b16 %v338
    %v1033 = vunpack.c.h.b16 %v338
    %v1034 = vunpack.c.l.b16 %v339
    %v1035 = vunpack.c.h.b16 %v339
    %v1036 = vunpack.c.l.b16 %v340
    %v1037 = vunpack.c.h.b16 %v340
    %v1038 = vunpack.c.l.b16 %v341
    %v1039 = vunpack.c.h.b16 %v341
    %v1040 = vunpack.c.l.b16 %v342
    %v1041 = vunpack.c.h.b16 %v342
    %v1042 = vunpack.c.l.b16 %v343
    %v1043 = vunpack.c.h.b16 %v343
    %v1044 = vunpack.c.l.b16 %v344
    %v1045 = vunpack.c.h.b16 %v344
    %v1046 = vunpack.c.l.b16 %v345
    %v1047 = vunpack.c.h.b16 %v345
    %v1048 = vunpack.c.l.b16 %v346
    %v1049 = vunpack.c.h.b16 %v346
    %v1050 = vunpack.c.l.b16 %v347
    %v1051 = vunpack.c.l.b16 %v348
    %v1052 = vunpack.c.h.b16 %v348
    %v1053 = vunpack.c.l.b16 %v349
    %v1054 = vunpack.c.h.b16 %v349
    %v1055 = vunpack.c.l.b16 %v350
    %v1056 = vunpack.c.h.b16 %v350
    %v1057 = vunpack.c.l.b16 %v351
    %v1058 = vunpack.c.h.b16 %v351
    %v1059 = vunpack.c.l.b16 %v352
    %v1060 = vunpack.c.h.b16 %v352
    %v1061 = vunpack.c.l.b16 %v353
    %v1062 = vunpack.c.h.b16 %v353
    %v1063 = vunpack.c.l.b16 %v354
    %v1064 = vunpack.c.h.b16 %v354
    %v1065 = vunpack.c.l.b16 %v355
    %v1066 = vunpack.c.h.b16 %v355
    %v1067 = vunpack.c.l.b16 %v356
    %v1068 = vunpack.c.h.b16 %v356
    %v1069 = vunpack.c.l.b16 %v357
    %v1070 = vunpack.c.l.b16 %v358
    %v1071 = vunpack.c.h.b16 %v358
    %v1072 = vunpack.c.l.b16 %v359
    %v1073 = vunpack.c.h.b16 %v359
    %v1074 = vunpack.c.l.b16 %v360
    %v1075 = vunpack.c.h.b16 %v360
    %v1076 = vunpack.c.l.b16 %v361
    %v1077 = vunpack.c.h.b16 %v361
    %v1078 = vunpack.c.l.b16 %v362
    %v1079 = vunpack.c.h.b16 %v362
    %v1080 = vunpack.c.l.b16 %v363
    %v1081 = vunpack.c.h.b16 %v363
    %v1082 = vunpack.c.l.b16 %v364
    %v1083 = vunpack.c.h.b16 %v364
    %v1084 = vunpack.c.l.b16 %v365
    %v1085 = vunpack.c.h.b16 %v365
    %v1086 = vunpack.c.l.b16 %v366
    %v1087 = vunpack.c.h.b16 %v366
    %v1088 = vunpack.c.l.b16 %v367
    %v1089 = vunpack.c.l.b16 %v368
    %v1090 = vunpack.c.h.b16 %v368
    %v1091 = vunpack.c.l.b16 %v369
    %v1092 = vunpack.c.h.b16 %v369
    %v1093 = vunpack.c.l.b16 %v370
    %v1094 = vunpack.c.h.b16 %v370
    %v1095 = vunpack.c.l.b16 %v371
    %v1096 = vunpack.c.h.b16 %v371
    %v1097 = vunpack.c.l.b16 %v372
    %v1098 = vunpack.c.h.b16 %v372
    %v1099 = vunpack.c.l.b16 %v373
    %v1100 = vunpack.c.h.b16 %v373
    %v1101 = vunpack.c.l.b16 %v374
    %v1102 = vunpack.c.h.b16 %v374
    %v1103 = vunpack.c.l.b16 %v375
    %v1104 = vunpack.c.h.b16 %v375
    %v1105 = vunpack.c.l.b16 %v376
    %v1106 = vunpack.c.h.b16 %v376
    %v1107 = vunpack.c.l.b16 %v377
    %v1108 = vunpack.c.l.b16 %v378
    %v1109 = vunpack.c.h.b16 %v378
    %v1110 = vunpack.c.l.b16 %v379
    %v1111 = vunpack.c.h.b16 %v379
    %v1112 = vunpack.c.l.b16 %v380
    %v1113 = vunpack.c.h.b16 %v380
    %v1114 = vunpack.c.l.b16 %v381
    %v1115 = vunpack.c.h.b16 %v381
    %v1116 = vunpack.c.l.b16 %v382
    %v1117 = vunpack.c.h.b16 %v382
    %v1118 = vunpack.c.l.b16 %v383
    %v1119 = vunpack.c.h.b16 %v383
    %v1120 = vunpack.c.l.b16 %v384
    %v1121 = vunpack.c.h.b16 %v384
    %v1122 = vunpack.c.l.b16 %v385
    %v1123 = vunpack.c.h.b16 %v385
    %v1124 = vunpack.c.l.b16 %v386
    %v1125 = vunpack.c.h.b16 %v386
    %v1126 = vunpack.c.l.b16 %v387
    %v1127 = vpack.c.b16 %v728, %v709
    %v1128 = vpack.c.b16 %v729, %v710
    %v1129 = vpack.c.b16 %v730, %v711
    %v1130 = vpack.c.b16 %v731, %v712
    %v1131 = vpack.c.b16 %v732, %v713
    %v1132 = vpack.c.b16 %v733, %v714
    %v1133 = vpack.c.b16 %v734, %v715
    %v1134 = vpack.c.b16 %v735, %v716
    %v1135 = vpack.c.b16 %v736, %v717
    %v1136 = vpack.c.b16 %v737, %v718
    %v1137 = vpack.c.b16 %v738, %v719
    %v1138 = vpack.c.b16 %v739, %v720
    %v1139 = vpack.c.b16 %v740, %v721
    %v1140 = vpack.c.b16 %v741, %v722
    %v1141 = vpack.c.b16 %v742, %v723
    %v1142 = vpack.c.b16 %v743, %v724
    %v1143 = vpack.c.b16 %v744, %v725
    %v1144 = vpack.c.b16 %v745, %v726
    %v1145 = vpack.c.b16 %v746, %v727
    %v1146 = vpack.c.b16 %v766, %v747
    %v1147 = vpack.c.b16 %v767, %v748
    %v1148 = vpack.c.b16 %v768, %v749
    %v1149 = vpack.c.b16 %v769, %v750
    %v1150 = vpack.c.b16 %v770, %v751
    %v1151 = vpack.c.b16 %v771, %v752
    %v1152 = vpack.c.b16 %v772, %v753
    %v1153 = vpack.c.b16 %v773, %v754
    %v1154 = vpack.c.b16 %v774, %v755
    %v1155 = vpack.c.b16 %v775, %v756
    %v1156 = vpack.c.b16 %v776, %v757
    %v1157 = vpack.c.b16 %v777, %v758
    %v1158 = vpack.c.b16 %v778, %v759
    %v1159 = vpack.c.b16 %v779, %v760
    %v1160 = vpack.c.b16 %v780, %v761
    %v1161 = vpack.c.b16 %v781, %v762
    %v1162 = vpack.c.b16 %v782, %v763
    %v1163 = vpack.c.b16 %v783, %v764
    %v1164 = vpack.c.b16 %v784, %v765
    %v1165 = vpack.c.b16 %v804, %v785
    %v1166 = vpack.c.b16 %v805, %v786
    %v1167 = vpack.c.b16 %v806, %v787
    %v1168 = vpack.c.b16 %v807, %v788
    %v1169 = vpack.c.b16 %v808, %v789
    %v1170 = vpack.c.b16 %v809, %v790
    %v1171 = vpack.c.b16 %v810, %v791
    %v1172 = vpack.c.b16 %v811, %v792
    %v1173 = vpack.c.b16 %v812, %v793
    %v1174 = vpack.c.b16 %v813, %v794
    %v1175 = vpack.c.b16 %v814, %v795
    %v1176 = vpack.c.b16 %v815, %v796
    %v1177 = vpack.c.b16 %v816, %v797
    %v1178 = vpack.c.b16 %v817, %v798
    %v1179 = vpack.c.b16 %v818, %v799
    %v1180 = vpack.c.b16 %v819, %v800
    %v1181 = vpack.c.b16 %v820, %v801
    %v1182 = vpack.c.b16 %v821, %v802
    %v1183 = vpack.c.b16 %v822, %v803
    %v1184 = vpack.c.b16 %v842, %v823
    %v1185 = vpack.c.b16 %v843, %v824
    %v1186 = vpack.c.b16 %v844, %v825
    %v1187 = vpack.c.b16 %v845, %v826
    %v1188 = vpack.c.b16 %v846, %v827
    %v1189 = vpack.c.b16 %v847, %v828
    %v1190 = vpack.c.b16 %v848, %v829
    %v1191 = vpack.c.b16 %v849, %v830
    %v1192 = vpack.c.b16 %v850, %v831
    %v1193 = vpack.c.b16 %v851, %v832
    %v1194 = vpack.c.b16 %v852, %v833
    %v1195 = vpack.c.b16 %v853, %v834
    %v1196 = vpack.c.b16 %v854, %v835
    %v1197 = vpack.c.b16 %v855, %v836
    %v1198 = vpack.c.b16 %v856, %v837
    %v1199 = vpack.c.b16 %v857, %v838
    %v1200 = vpack.c.b16 %v858, %v839
    %v1201 = vpack.c.b16 %v859, %v840
    %v1202 = vpack.c.b16 %v860, %v841
    %v1203 = vpack.c.b16 %v880, %v861
    %v1204 = vpack.c.b16 %v881, %v862
    %v1205 = vpack.c.b16 %v882, %v863
    %v1206 = vpack.c.b16 %v883, %v864
    %v1207 = vpack.c.b16 %v884, %v865
    %v1208 = vpack.c.b16 %v885, %v866
    %v1209 = vpack.c.b16 %v886, %v867
    %v1210 = vpack.c.b16 %v887, %v868
    %v1211 = vpack.c.b16 %v888, %v869
    %v1212 = vpack.c.b16 %v889, %v870
    %v1213 = vpack.c.b16 %v890, %v871
    %v1214 = vpack.c.b16 %v891, %v872
    %v1215 = vpack.c.b16 %v892, %v873
    %v1216 = vpack.c.b16 %v893, %v874
    %v1217 = vpack.c.b16 %v894, %v875
    %v1218 = vpack.c.b16 %v895, %v876
    %v1219 = vpack.c.b16 %v896, %v877
    %v1220 = vpack.c.b16 %v897, %v878
    %v1221 = vpack.c.b16 %v898, %v879
    %v1222 = vpack.c.b16 %v918, %v899
    %v1223 = vpack.c.b16 %v919, %v900
    %v1224 = vpack.c.b16 %v920, %v901
    %v1225 = vpack.c.b16 %v921, %v902
    %v1226 = vpack.c.b16 %v922, %v903
    %v1227 = vpack.c.b16 %v923, %v904
    %v1228 = vpack.c.b16 %v924, %v905
    %v1229 = vpack.c.b16 %v925, %v906
    %v1230 = vpack.c.b16 %v926, %v907
    %v1231 = vpack.c.b16 %v927, %v908
    %v1232 = vpack.c.b16 %v928, %v909
    %v1233 = vpack.c.b16 %v929, %v910
    %v1234 = vpack.c.b16 %v930, %v911
    %v1235 = vpack.c.b16 %v931, %v912
    %v1236 = vpack.c.b16 %v932, %v913
    %v1237 = vpack.c.b16 %v933, %v914
    %v1238 = vpack.c.b16 %v934, %v915
    %v1239 = vpack.c.b16 %v935, %v916
    %v1240 = vpack.c.b16 %v936, %v917
    %v1241 = vpack.c.b16 %v956, %v937
    %v1242 = vpack.c.b16 %v957, %v938
    %v1243 = vpack.c.b16 %v958, %v939
    %v1244 = vpack.c.b16 %v959, %v940
    %v1245 = vpack.c.b16 %v960, %v941
    %v1246 = vpack.c.b16 %v961, %v942
    %v1247 = vpack.c.b16 %v962, %v943
    %v1248 = vpack.c.b16 %v963, %v944
    %v1249 = vpack.c.b16 %v964, %v945
    %v1250 = vpack.c.b16 %v965, %v946
    %v1251 = vpack.c.b16 %v966, %v947
    %v1252 = vpack.c.b16 %v967, %v948
    %v1253 = vpack.c.b16 %v968, %v949
    %v1254 = vpack.c.b16 %v969, %v950
    %v1255 = vpack.c.b16 %v970, %v951
    %v1256 = vpack.c.b16 %v971, %v952
    %v1257 = vpack.c.b16 %v972, %v953
    %v1258 = vpack.c.b16 %v973, %v954
    %v1259 = vpack.c.b16 %v974, %v955
    %v1260 = vpack.c.b16 %v994, %v975
    %v1261 = vpack.c.b16 %v995, %v976
    %v1262 = vpack.c.b16 %v996, %v977
    %v1263 = vpack.c.b16 %v997, %v978
    %v1264 = vpack.c.b16 %v998, %v979
    %v1265 = vpack.c.b16 %v999, %v980
    %v1266 = vpack.c.b16 %v1000, %v981
    %v1267 = vpack.c.b16 %v1001, %v982
    %v1268 = vpack.c.b16 %v1002, %v983
    %v1269 = vpack.c.b16 %v1003, %v984
    %v1270 = vpack.c.b16 %v1004, %v985
    %v1271 = vpack.c.b16 %v1005, %v986
    %v1272 = vpack.c.b16 %v1006, %v987
    %v1273 = vpack.c.b16 %v1007, %v988
    %v1274 = vpack.c.b16 %v1008, %v989
    %v1275 = vpack.c.b16 %v1009, %v990
    %v1276 = vpack.c.b16 %v1010, %v991
    %v1277 = vpack.c.b16 %v1011, %v992
    %v1278 = vpack.c.b16 %v1012, %v993
    %v1279 = vpack.c.b16 %v1032, %v1013
    %v1280 = vpack.c.b16 %v1033, %v1014
    %v1281 = vpack.c.b16 %v1034, %v1015
    %v1282 = vpack.c.b16 %v1035, %v1016
    %v1283 = vpack.c.b16 %v1036, %v1017
    %v1284 = vpack.c.b16 %v1037, %v1018
    %v1285 = vpack.c.b16 %v1038, %v1019
    %v1286 = vpack.c.b16 %v1039, %v1020
    %v1287 = vpack.c.b16 %v1040, %v1021
    %v1288 = vpack.c.b16 %v1041, %v1022
    %v1289 = vpack.c.b16 %v1042, %v1023
    %v1290 = vpack.c.b16 %v1043, %v1024
    %v1291 = vpack.c.b16 %v1044, %v1025
    %v1292 = vpack.c.b16 %v1045, %v1026
    %v1293 = vpack.c.b16 %v1046, %v1027
    %v1294 = vpack.c.b16 %v1047, %v1028
    %v1295 = vpack.c.b16 %v1048, %v1029
    %v1296 = vpack.c.b16 %v1049, %v1030
    %v1297 = vpack.c.b16 %v1050, %v1031
    %v1298 = vpack.c.b16 %v1070, %v1051
    %v1299 = vpack.c.b16 %v1071, %v1052
    %v1300 = vpack.c.b16 %v1072, %v1053
    %v1301 = vpack.c.b16 %v1073, %v1054
    %v1302 = vpack.c.b16 %v1074, %v1055
    %v1303 = vpack.c.b16 %v1075, %v1056
    %v1304 = vpack.c.b16 %v1076, %v1057
    %v1305 = vpack.c.b16 %v1077, %v1058
    %v1306 = vpack.c.b16 %v1078, %v1059
    %v1307 = vpack.c.b16 %v1079, %v1060
    %v1308 = vpack.c.b16 %v1080, %v1061
    %v1309 = vpack.c.b16 %v1081, %v1062
    %v1310 = vpack.c.b16 %v1082, %v1063
    %v1311 = vpack.c.b16 %v1083, %v1064
    %v1312 = vpack.c.b16 %v1084, %v1065
    %v1313 = vpack.c.b16 %v1085, %v1066
    %v1314 = vpack.c.b16 %v1086, %v1067
    %v1315 = vpack.c.b16 %v1087, %v1068
    %v1316 = vpack.c.b16 %v1088, %v1069
    %v1317 = vpack.c.b16 %v1108, %v1089
    %v1318 = vpack.c.b16 %v1109, %v1090
    %v1319 = vpack.c.b16 %v1110, %v1091
    %v1320 = vpack.c.b16 %v1111, %v1092
    %v1321 = vpack.c.b16 %v1112, %v1093
    %v1322 = vpack.c.b16 %v1113, %v1094
    %v1323 = vpack.c.b16 %v1114, %v1095
    %v1324 = vpack.c.b16 %v1115, %v1096
    %v1325 = vpack.c.b16 %v1116, %v1097
    %v1326 = vpack.c.b16 %v1117, %v1098
    %v1327 = vpack.c.b16 %v1118, %v1099
    %v1328 = vpack.c.b16 %v1119, %v1100
    %v1329 = vpack.c.b16 %v1120, %v1101
    %v1330 = vpack.c.b16 %v1121, %v1102
    %v1331 = vpack.c.b16 %v1122, %v1103
    %v1332 = vpack.c.b16 %v1123, %v1104
    %v1333 = vpack.c.b16 %v1124, %v1105
    %v1334 = vpack.c.b16 %v1125, %v1106
    %v1335 = vpack.c.b16 %v1126, %v1107
    %vm1545 = vcmask 392192
    %v1547 = vsel %vm1545, %v167, 0
    %1549 = vmatprep.subr.bf16.mxu0 %v1128
    %1550 = vmatpush1.bf16.msra.mxu0 %v1127
    %1551 = vmatprep.subr.bf16.mxu0 %v1147
    %1552 = vmatpush1.bf16.msra.mxu0 %v1146
    %1553 = vmatprep.subr.bf16.mxu0 %v1166
    %1554 = vmatpush1.bf16.msra.mxu0 %v1165
    %1555 = vmatprep.subr.bf16.mxu0 %v1185
    %1556 = vmatpush1.bf16.msra.mxu0 %v1184
    %1557 = vmatprep.subr.bf16.mxu0 %v1204
    %1558 = vmatpush1.bf16.msra.mxu0 %v1203
    %1559 = vmatprep.subr.bf16.mxu0 %v1223
    %1560 = vmatpush1.bf16.msra.mxu0 %v1222
    %1561 = vmatprep.subr.bf16.mxu0 %v1242
    %1562 = vmatpush1.bf16.msra.mxu0 %v1241
    %1563 = vmatprep.subr.bf16.mxu0 %v1261
    %1564 = vmatpush1.bf16.msra.mxu0 %v1260
    %1565 = vmatprep.subr.bf16.mxu0 %v1280
    %1566 = vmatpush1.bf16.msra.mxu0 %v1279
    %1567 = vmatprep.subr.bf16.mxu0 %v1299
    %1568 = vmatpush1.bf16.msra.mxu0 %v1298
    %1569 = vmatprep.subr.bf16.mxu0 %v1318
    %1570 = vmatpush1.bf16.msra.mxu0 %v1317
    %1571 = vmatprep.subr.bf16.mxu0 0
    %1572 = vmatpush1.bf16.msra.mxu0 0
    %1573 = vmatprep.subr.bf16.mxu0 0
    %1574 = vmatpush1.bf16.msra.mxu0 0
    %1575 = vmatprep.subr.bf16.mxu0 0
    %1576 = vmatpush1.bf16.msra.mxu0 0
    %1577 = vmatprep.subr.bf16.mxu0 0
    %1578 = vmatpush1.bf16.msra.mxu0 0
    %1579 = vmatprep.subr.bf16.mxu0 0
    %1580 = vmatpush1.bf16.msra.mxu0 0
    %1581 = vmatprep.mubr.bf16.mxu0 %v1547
    %1582 = vmatmul.mubr.bf16.gmra.mrb[0].mxu0 %v166
    %v1583 = vpop.f32.mrb[0].mxu0
    %v1584 = vadd.f32 %v397, %v1583
    %v1585 = vpop.f32.mrb[0].mxu0
    %v1586 = vadd.f32 %v401, %v1585
    %v1587 = vpop.f32.mrb[0].mxu0
    %v1588 = vpop.f32.mrb[0].mxu0
    %1589 = vdwg.mxu0
    %1590 = vmatprep.subr.bf16.mxu0 %v1130
    %1591 = vmatpush1.bf16.msra.mxu0 %v1129
    %1592 = vmatprep.subr.bf16.mxu0 %v1149
    %1593 = vmatpush1.bf16.msra.mxu0 %v1148
    %1594 = vmatprep.subr.bf16.mxu0 %v1168
    %1595 = vmatpush1.bf16.msra.mxu0 %v1167
    %1596 = vmatprep.subr.bf16.mxu0 %v1187
    %1597 = vmatpush1.bf16.msra.mxu0 %v1186
    %1598 = vmatprep.subr.bf16.mxu0 %v1206
    %1599 = vmatpush1.bf16.msra.mxu0 %v1205
    %1600 = vmatprep.subr.bf16.mxu0 %v1225
    %1601 = vmatpush1.bf16.msra.mxu0 %v1224
    %1602 = vmatprep.subr.bf16.mxu0 %v1244
    %1603 = vmatpush1.bf16.msra.mxu0 %v1243
    %1604 = vmatprep.subr.bf16.mxu0 %v1263
    %1605 = vmatpush1.bf16.msra.mxu0 %v1262
    %1606 = vmatprep.subr.bf16.mxu0 %v1282
    %1607 = vmatpush1.bf16.msra.mxu0 %v1281
    %1608 = vmatprep.subr.bf16.mxu0 %v1301
    %1609 = vmatpush1.bf16.msra.mxu0 %v1300
    %1610 = vmatprep.subr.bf16.mxu0 %v1320
    %1611 = vmatpush1.bf16.msra.mxu0 %v1319
    %1612 = vmatprep.subr.bf16.mxu0 0
    %1613 = vmatpush1.bf16.msra.mxu0 0
    %1614 = vmatprep.subr.bf16.mxu0 0
    %1615 = vmatpush1.bf16.msra.mxu0 0
    %1616 = vmatprep.subr.bf16.mxu0 0
    %1617 = vmatpush1.bf16.msra.mxu0 0
    %1618 = vmatprep.subr.bf16.mxu0 0
    %1619 = vmatpush1.bf16.msra.mxu0 0
    %1620 = vmatprep.subr.bf16.mxu0 0
    %1621 = vmatpush1.bf16.msra.mxu0 0
    %1622 = vmatprep.mubr.bf16.mxu0 %v1547
    %1623 = vmatmul.mubr.bf16.gmra.mrb[0].mxu0 %v166
    %v1624 = vpop.f32.mrb[0].mxu0
    %v1625 = vadd.f32 %v405, %v1624
    %v1626 = vpop.f32.mrb[0].mxu0
    %v1627 = vadd.f32 %v409, %v1626
    %v1628 = vpop.f32.mrb[0].mxu0
    %v1629 = vpop.f32.mrb[0].mxu0
    %1630 = vdwg.mxu0
    %1631 = vmatprep.subr.bf16.mxu0 %v1132
    %1632 = vmatpush1.bf16.msra.mxu0 %v1131
    %1633 = vmatprep.subr.bf16.mxu0 %v1151
    %1634 = vmatpush1.bf16.msra.mxu0 %v1150
    %1635 = vmatprep.subr.bf16.mxu0 %v1170
    %1636 = vmatpush1.bf16.msra.mxu0 %v1169
    %1637 = vmatprep.subr.bf16.mxu0 %v1189
    %1638 = vmatpush1.bf16.msra.mxu0 %v1188
    %1639 = vmatprep.subr.bf16.mxu0 %v1208
    %1640 = vmatpush1.bf16.msra.mxu0 %v1207
    %1641 = vmatprep.subr.bf16.mxu0 %v1227
    %1642 = vmatpush1.bf16.msra.mxu0 %v1226
    %1643 = vmatprep.subr.bf16.mxu0 %v1246
    %1644 = vmatpush1.bf16.msra.mxu0 %v1245
    %1645 = vmatprep.subr.bf16.mxu0 %v1265
    %1646 = vmatpush1.bf16.msra.mxu0 %v1264
    %1647 = vmatprep.subr.bf16.mxu0 %v1284
    %1648 = vmatpush1.bf16.msra.mxu0 %v1283
    %1649 = vmatprep.subr.bf16.mxu0 %v1303
    %1650 = vmatpush1.bf16.msra.mxu0 %v1302
    %1651 = vmatprep.subr.bf16.mxu0 %v1322
    %1652 = vmatpush1.bf16.msra.mxu0 %v1321
    %1653 = vmatprep.subr.bf16.mxu0 0
    %1654 = vmatpush1.bf16.msra.mxu0 0
    %1655 = vmatprep.subr.bf16.mxu0 0
    %1656 = vmatpush1.bf16.msra.mxu0 0
    %1657 = vmatprep.subr.bf16.mxu0 0
    %1658 = vmatpush1.bf16.msra.mxu0 0
    %1659 = vmatprep.subr.bf16.mxu0 0
    %1660 = vmatpush1.bf16.msra.mxu0 0
    %1661 = vmatprep.subr.bf16.mxu0 0
    %1662 = vmatpush1.bf16.msra.mxu0 0
    %1663 = vmatprep.mubr.bf16.mxu0 %v1547
    %1664 = vmatmul.mubr.bf16.gmra.mrb[0].mxu0 %v166
    %v1665 = vpop.f32.mrb[0].mxu0
    %v1666 = vadd.f32 %v413, %v1665
    %v1667 = vpop.f32.mrb[0].mxu0
    %v1668 = vadd.f32 %v417, %v1667
    %v1669 = vpop.f32.mrb[0].mxu0
    %v1670 = vpop.f32.mrb[0].mxu0
    %1671 = vdwg.mxu0
    %1672 = vmatprep.subr.bf16.mxu0 %v1134
    %1673 = vmatpush1.bf16.msra.mxu0 %v1133
    %1674 = vmatprep.subr.bf16.mxu0 %v1153
    %1675 = vmatpush1.bf16.msra.mxu0 %v1152
    %1676 = vmatprep.subr.bf16.mxu0 %v1172
    %1677 = vmatpush1.bf16.msra.mxu0 %v1171
    %1678 = vmatprep.subr.bf16.mxu0 %v1191
    %1679 = vmatpush1.bf16.msra.mxu0 %v1190
    %1680 = vmatprep.subr.bf16.mxu0 %v1210
    %1681 = vmatpush1.bf16.msra.mxu0 %v1209
    %1682 = vmatprep.subr.bf16.mxu0 %v1229
    %1683 = vmatpush1.bf16.msra.mxu0 %v1228
    %1684 = vmatprep.subr.bf16.mxu0 %v1248
    %1685 = vmatpush1.bf16.msra.mxu0 %v1247
    %1686 = vmatprep.subr.bf16.mxu0 %v1267
    %1687 = vmatpush1.bf16.msra.mxu0 %v1266
    %1688 = vmatprep.subr.bf16.mxu0 %v1286
    %1689 = vmatpush1.bf16.msra.mxu0 %v1285
    %1690 = vmatprep.subr.bf16.mxu0 %v1305
    %1691 = vmatpush1.bf16.msra.mxu0 %v1304
    %1692 = vmatprep.subr.bf16.mxu0 %v1324
    %1693 = vmatpush1.bf16.msra.mxu0 %v1323
    %1694 = vmatprep.subr.bf16.mxu0 0
    %1695 = vmatpush1.bf16.msra.mxu0 0
    %1696 = vmatprep.subr.bf16.mxu0 0
    %1697 = vmatpush1.bf16.msra.mxu0 0
    %1698 = vmatprep.subr.bf16.mxu0 0
    %1699 = vmatpush1.bf16.msra.mxu0 0
    %1700 = vmatprep.subr.bf16.mxu0 0
    %1701 = vmatpush1.bf16.msra.mxu0 0
    %1702 = vmatprep.subr.bf16.mxu0 0
    %1703 = vmatpush1.bf16.msra.mxu0 0
    %1704 = vmatprep.mubr.bf16.mxu0 %v1547
    %1705 = vmatmul.mubr.bf16.gmra.mrb[0].mxu0 %v166
    %v1706 = vpop.f32.mrb[0].mxu0
    %v1707 = vadd.f32 %v421, %v1706
    %v1708 = vpop.f32.mrb[0].mxu0
    %v1709 = vadd.f32 %v425, %v1708
    %v1710 = vpop.f32.mrb[0].mxu0
    %v1711 = vpop.f32.mrb[0].mxu0
    %1712 = vdwg.mxu0
    %1713 = vmatprep.subr.bf16.mxu0 %v1136
    %1714 = vmatpush1.bf16.msra.mxu0 %v1135
    %1715 = vmatprep.subr.bf16.mxu0 %v1155
    %1716 = vmatpush1.bf16.msra.mxu0 %v1154
    %1717 = vmatprep.subr.bf16.mxu0 %v1174
    %1718 = vmatpush1.bf16.msra.mxu0 %v1173
    %1719 = vmatprep.subr.bf16.mxu0 %v1193
    %1720 = vmatpush1.bf16.msra.mxu0 %v1192
    %1721 = vmatprep.subr.bf16.mxu0 %v1212
    %1722 = vmatpush1.bf16.msra.mxu0 %v1211
    %1723 = vmatprep.subr.bf16.mxu0 %v1231
    %1724 = vmatpush1.bf16.msra.mxu0 %v1230
    %1725 = vmatprep.subr.bf16.mxu0 %v1250
    %1726 = vmatpush1.bf16.msra.mxu0 %v1249
    %1727 = vmatprep.subr.bf16.mxu0 %v1269
    %1728 = vmatpush1.bf16.msra.mxu0 %v1268
    %1729 = vmatprep.subr.bf16.mxu0 %v1288
    %1730 = vmatpush1.bf16.msra.mxu0 %v1287
    %1731 = vmatprep.subr.bf16.mxu0 %v1307
    %1732 = vmatpush1.bf16.msra.mxu0 %v1306
    %1733 = vmatprep.subr.bf16.mxu0 %v1326
    %1734 = vmatpush1.bf16.msra.mxu0 %v1325
    %1735 = vmatprep.subr.bf16.mxu0 0
    %1736 = vmatpush1.bf16.msra.mxu0 0
    %1737 = vmatprep.subr.bf16.mxu0 0
    %1738 = vmatpush1.bf16.msra.mxu0 0
    %1739 = vmatprep.subr.bf16.mxu0 0
    %1740 = vmatpush1.bf16.msra.mxu0 0
    %1741 = vmatprep.subr.bf16.mxu0 0
    %1742 = vmatpush1.bf16.msra.mxu0 0
    %1743 = vmatprep.subr.bf16.mxu0 0
    %1744 = vmatpush1.bf16.msra.mxu0 0
    %1745 = vmatprep.mubr.bf16.mxu0 %v1547
    %1746 = vmatmul.mubr.bf16.gmra.mrb[0].mxu0 %v166
    %v1747 = vpop.f32.mrb[0].mxu0
    %v1748 = vadd.f32 %v429, %v1747
    %v1749 = vpop.f32.mrb[0].mxu0
    %v1750 = vadd.f32 %v433, %v1749
    %v1751 = vpop.f32.mrb[0].mxu0
    %v1752 = vpop.f32.mrb[0].mxu0
    %1753 = vdwg.mxu0
    %1754 = vmatprep.subr.bf16.mxu0 %v1138
    %1755 = vmatpush1.bf16.msra.mxu0 %v1137
    %1756 = vmatprep.subr.bf16.mxu0 %v1157
    %1757 = vmatpush1.bf16.msra.mxu0 %v1156
    %1758 = vmatprep.subr.bf16.mxu0 %v1176
    %1759 = vmatpush1.bf16.msra.mxu0 %v1175
    %1760 = vmatprep.subr.bf16.mxu0 %v1195
    %1761 = vmatpush1.bf16.msra.mxu0 %v1194
    %1762 = vmatprep.subr.bf16.mxu0 %v1214
    %1763 = vmatpush1.bf16.msra.mxu0 %v1213
    %1764 = vmatprep.subr.bf16.mxu0 %v1233
    %1765 = vmatpush1.bf16.msra.mxu0 %v1232
    %1766 = vmatprep.subr.bf16.mxu0 %v1252
    %1767 = vmatpush1.bf16.msra.mxu0 %v1251
    %1768 = vmatprep.subr.bf16.mxu0 %v1271
    %1769 = vmatpush1.bf16.msra.mxu0 %v1270
    %1770 = vmatprep.subr.bf16.mxu0 %v1290
    %1771 = vmatpush1.bf16.msra.mxu0 %v1289
    %1772 = vmatprep.subr.bf16.mxu0 %v1309
    %1773 = vmatpush1.bf16.msra.mxu0 %v1308
    %1774 = vmatprep.subr.bf16.mxu0 %v1328
    %1775 = vmatpush1.bf16.msra.mxu0 %v1327
    %1776 = vmatprep.subr.bf16.mxu0 0
    %1777 = vmatpush1.bf16.msra.mxu0 0
    %1778 = vmatprep.subr.bf16.mxu0 0
    %1779 = vmatpush1.bf16.msra.mxu0 0
    %1780 = vmatprep.subr.bf16.mxu0 0
    %1781 = vmatpush1.bf16.msra.mxu0 0
    %1782 = vmatprep.subr.bf16.mxu0 0
    %1783 = vmatpush1.bf16.msra.mxu0 0
    %1784 = vmatprep.subr.bf16.mxu0 0
    %1785 = vmatpush1.bf16.msra.mxu0 0
    %1786 = vmatprep.mubr.bf16.mxu0 %v1547
    %1787 = vmatmul.mubr.bf16.gmra.mrb[0].mxu0 %v166
    %v1788 = vpop.f32.mrb[0].mxu0
    %v1789 = vadd.f32 %v437, %v1788
    %v1790 = vpop.f32.mrb[0].mxu0
    %v1791 = vadd.f32 %v441, %v1790
    %v1792 = vpop.f32.mrb[0].mxu0
    %v1793 = vpop.f32.mrb[0].mxu0
    %1794 = vdwg.mxu0
    %1795 = vmatprep.subr.bf16.mxu0 %v1140
    %1796 = vmatpush1.bf16.msra.mxu0 %v1139
    %1797 = vmatprep.subr.bf16.mxu0 %v1159
    %1798 = vmatpush1.bf16.msra.mxu0 %v1158
    %1799 = vmatprep.subr.bf16.mxu0 %v1178
    %1800 = vmatpush1.bf16.msra.mxu0 %v1177
    %1801 = vmatprep.subr.bf16.mxu0 %v1197
    %1802 = vmatpush1.bf16.msra.mxu0 %v1196
    %1803 = vmatprep.subr.bf16.mxu0 %v1216
    %1804 = vmatpush1.bf16.msra.mxu0 %v1215
    %1805 = vmatprep.subr.bf16.mxu0 %v1235
    %1806 = vmatpush1.bf16.msra.mxu0 %v1234
    %1807 = vmatprep.subr.bf16.mxu0 %v1254
    %1808 = vmatpush1.bf16.msra.mxu0 %v1253
    %1809 = vmatprep.subr.bf16.mxu0 %v1273
    %1810 = vmatpush1.bf16.msra.mxu0 %v1272
    %1811 = vmatprep.subr.bf16.mxu0 %v1292
    %1812 = vmatpush1.bf16.msra.mxu0 %v1291
    %1813 = vmatprep.subr.bf16.mxu0 %v1311
    %1814 = vmatpush1.bf16.msra.mxu0 %v1310
    %1815 = vmatprep.subr.bf16.mxu0 %v1330
    %1816 = vmatpush1.bf16.msra.mxu0 %v1329
    %1817 = vmatprep.subr.bf16.mxu0 0
    %1818 = vmatpush1.bf16.msra.mxu0 0
    %1819 = vmatprep.subr.bf16.mxu0 0
    %1820 = vmatpush1.bf16.msra.mxu0 0
    %1821 = vmatprep.subr.bf16.mxu0 0
    %1822 = vmatpush1.bf16.msra.mxu0 0
    %1823 = vmatprep.subr.bf16.mxu0 0
    %1824 = vmatpush1.bf16.msra.mxu0 0
    %1825 = vmatprep.subr.bf16.mxu0 0
    %1826 = vmatpush1.bf16.msra.mxu0 0
    %1827 = vmatprep.mubr.bf16.mxu0 %v1547
    %1828 = vmatmul.mubr.bf16.gmra.mrb[0].mxu0 %v166
    %v1829 = vpop.f32.mrb[0].mxu0
    %v1830 = vadd.f32 %v445, %v1829
    %v1831 = vpop.f32.mrb[0].mxu0
    %v1832 = vadd.f32 %v449, %v1831
    %v1833 = vpop.f32.mrb[0].mxu0
    %v1834 = vpop.f32.mrb[0].mxu0
    %1835 = vdwg.mxu0
    %1836 = vmatprep.subr.bf16.mxu0 %v1142
    %1837 = vmatpush1.bf16.msra.mxu0 %v1141
    %1838 = vmatprep.subr.bf16.mxu0 %v1161
    %1839 = vmatpush1.bf16.msra.mxu0 %v1160
    %1840 = vmatprep.subr.bf16.mxu0 %v1180
    %1841 = vmatpush1.bf16.msra.mxu0 %v1179
    %1842 = vmatprep.subr.bf16.mxu0 %v1199
    %1843 = vmatpush1.bf16.msra.mxu0 %v1198
    %1844 = vmatprep.subr.bf16.mxu0 %v1218
    %1845 = vmatpush1.bf16.msra.mxu0 %v1217
    %1846 = vmatprep.subr.bf16.mxu0 %v1237
    %1847 = vmatpush1.bf16.msra.mxu0 %v1236
    %1848 = vmatprep.subr.bf16.mxu0 %v1256
    %1849 = vmatpush1.bf16.msra.mxu0 %v1255
    %1850 = vmatprep.subr.bf16.mxu0 %v1275
    %1851 = vmatpush1.bf16.msra.mxu0 %v1274
    %1852 = vmatprep.subr.bf16.mxu0 %v1294
    %1853 = vmatpush1.bf16.msra.mxu0 %v1293
    %1854 = vmatprep.subr.bf16.mxu0 %v1313
    %1855 = vmatpush1.bf16.msra.mxu0 %v1312
    %1856 = vmatprep.subr.bf16.mxu0 %v1332
    %1857 = vmatpush1.bf16.msra.mxu0 %v1331
    %1858 = vmatprep.subr.bf16.mxu0 0
    %1859 = vmatpush1.bf16.msra.mxu0 0
    %1860 = vmatprep.subr.bf16.mxu0 0
    %1861 = vmatpush1.bf16.msra.mxu0 0
    %1862 = vmatprep.subr.bf16.mxu0 0
    %1863 = vmatpush1.bf16.msra.mxu0 0
    %1864 = vmatprep.subr.bf16.mxu0 0
    %1865 = vmatpush1.bf16.msra.mxu0 0
    %1866 = vmatprep.subr.bf16.mxu0 0
    %1867 = vmatpush1.bf16.msra.mxu0 0
    %1868 = vmatprep.mubr.bf16.mxu0 %v1547
    %1869 = vmatmul.mubr.bf16.gmra.mrb[0].mxu0 %v166
    %v1870 = vpop.f32.mrb[0].mxu0
    %v1871 = vadd.f32 %v453, %v1870
    %v1872 = vpop.f32.mrb[0].mxu0
    %v1873 = vadd.f32 %v457, %v1872
    %v1874 = vpop.f32.mrb[0].mxu0
    %v1875 = vpop.f32.mrb[0].mxu0
    %1876 = vdwg.mxu0
    %1877 = vmatprep.subr.bf16.mxu0 %v1144
    %1878 = vmatpush1.bf16.msra.mxu0 %v1143
    %1879 = vmatprep.subr.bf16.mxu0 %v1163
    %1880 = vmatpush1.bf16.msra.mxu0 %v1162
    %1881 = vmatprep.subr.bf16.mxu0 %v1182
    %1882 = vmatpush1.bf16.msra.mxu0 %v1181
    %1883 = vmatprep.subr.bf16.mxu0 %v1201
    %1884 = vmatpush1.bf16.msra.mxu0 %v1200
    %1885 = vmatprep.subr.bf16.mxu0 %v1220
    %1886 = vmatpush1.bf16.msra.mxu0 %v1219
    %1887 = vmatprep.subr.bf16.mxu0 %v1239
    %1888 = vmatpush1.bf16.msra.mxu0 %v1238
    %1889 = vmatprep.subr.bf16.mxu0 %v1258
    %1890 = vmatpush1.bf16.msra.mxu0 %v1257
    %1891 = vmatprep.subr.bf16.mxu0 %v1277
    %1892 = vmatpush1.bf16.msra.mxu0 %v1276
    %1893 = vmatprep.subr.bf16.mxu0 %v1296
    %1894 = vmatpush1.bf16.msra.mxu0 %v1295
    %1895 = vmatprep.subr.bf16.mxu0 %v1315
    %1896 = vmatpush1.bf16.msra.mxu0 %v1314
    %1897 = vmatprep.subr.bf16.mxu0 %v1334
    %1898 = vmatpush1.bf16.msra.mxu0 %v1333
    %1899 = vmatprep.subr.bf16.mxu0 0
    %1900 = vmatpush1.bf16.msra.mxu0 0
    %1901 = vmatprep.subr.bf16.mxu0 0
    %1902 = vmatpush1.bf16.msra.mxu0 0
    %1903 = vmatprep.subr.bf16.mxu0 0
    %1904 = vmatpush1.bf16.msra.mxu0 0
    %1905 = vmatprep.subr.bf16.mxu0 0
    %1906 = vmatpush1.bf16.msra.mxu0 0
    %1907 = vmatprep.subr.bf16.mxu0 0
    %1908 = vmatpush1.bf16.msra.mxu0 0
    %1909 = vmatprep.mubr.bf16.mxu0 %v1547
    %1910 = vmatmul.mubr.bf16.gmra.mrb[0].mxu0 %v166
    %v1911 = vpop.f32.mrb[0].mxu0
    %v1912 = vadd.f32 %v461, %v1911
    %v1913 = vpop.f32.mrb[0].mxu0
    %v1914 = vadd.f32 %v465, %v1913
    %v1915 = vpop.f32.mrb[0].mxu0
    %v1916 = vpop.f32.mrb[0].mxu0
    %1917 = vdwg.mxu0
    %1918 = vmatprep.subr.bf16.mxu0 0
    %1919 = vmatpush1.bf16.msra.mxu0 %v1145
    %1920 = vmatprep.subr.bf16.mxu0 0
    %1921 = vmatpush1.bf16.msra.mxu0 %v1164
    %1922 = vmatprep.subr.bf16.mxu0 0
    %1923 = vmatpush1.bf16.msra.mxu0 %v1183
    %1924 = vmatprep.subr.bf16.mxu0 0
    %1925 = vmatpush1.bf16.msra.mxu0 %v1202
    %1926 = vmatprep.subr.bf16.mxu0 0
    %1927 = vmatpush1.bf16.msra.mxu0 %v1221
    %1928 = vmatprep.subr.bf16.mxu0 0
    %1929 = vmatpush1.bf16.msra.mxu0 %v1240
    %1930 = vmatprep.subr.bf16.mxu0 0
    %1931 = vmatpush1.bf16.msra.mxu0 %v1259
    %1932 = vmatprep.subr.bf16.mxu0 0
    %1933 = vmatpush1.bf16.msra.mxu0 %v1278
    %1934 = vmatprep.subr.bf16.mxu0 0
    %1935 = vmatpush1.bf16.msra.mxu0 %v1297
    %1936 = vmatprep.subr.bf16.mxu0 0
    %1937 = vmatpush1.bf16.msra.mxu0 %v1316
    %1938 = vmatprep.subr.bf16.mxu0 0
    %1939 = vmatpush1.bf16.msra.mxu0 %v1335
    %1940 = vmatprep.subr.bf16.mxu0 0
    %1941 = vmatpush1.bf16.msra.mxu0 0
    %1942 = vmatprep.subr.bf16.mxu0 0
    %1943 = vmatpush1.bf16.msra.mxu0 0
    %1944 = vmatprep.subr.bf16.mxu0 0
    %1945 = vmatpush1.bf16.msra.mxu0 0
    %1946 = vmatprep.subr.bf16.mxu0 0
    %1947 = vmatpush1.bf16.msra.mxu0 0
    %1948 = vmatprep.subr.bf16.mxu0 0
    %1949 = vmatpush1.bf16.msra.mxu0 0
    %1950 = vmatprep.mubr.bf16.mxu0 %v1547
    %1951 = vmatmul.mubr.bf16.gmra.mrb[0].mxu0 %v166
    %v1952 = vpop.f32.mrb[0].mxu0
    %v1953 = vadd.f32 %v469, %v1952
    %v1954 = vpop.f32.mrb[0].mxu0
    %v1955 = vpop.f32.mrb[0].mxu0
    %v1956 = vpop.f32.mrb[0].mxu0
    %1957 = vdwg.mxu0
    %v1958 = vmul.f32 %v1584, 0.5
    %v1959 = vmul.f32 %v1586, 0.5
    %v1960 = vmul.f32 %v1625, 0.5
    %v1961 = vmul.f32 %v1627, 0.5
    %v1962 = vmul.f32 %v1666, 0.5
    %v1963 = vmul.f32 %v1668, 0.5
    %v1964 = vmul.f32 %v1707, 0.5
    %v1965 = vmul.f32 %v1709, 0.5
    %v1966 = vmul.f32 %v1748, 0.5
    %v1967 = vmul.f32 %v1750, 0.5
    %v1968 = vmul.f32 %v1789, 0.5
    %v1969 = vmul.f32 %v1791, 0.5
    %v1970 = vmul.f32 %v1830, 0.5
    %v1971 = vmul.f32 %v1832, 0.5
    %v1972 = vmul.f32 %v1871, 0.5
    %v1973 = vmul.f32 %v1873, 0.5
    %v1974 = vmul.f32 %v1912, 0.5
    %v1975 = vmul.f32 %v1914, 0.5
    %v1976 = vmul.f32 %v1953, 0.5
    %v1977 = vtanh.pop %v1958
    %v1978 = vtanh.pop %v1959
    %v1979 = vtanh.pop %v1960
    %v1980 = vtanh.pop %v1961
    %v1981 = vtanh.pop %v1962
    %v1982 = vtanh.pop %v1963
    %v1983 = vtanh.pop %v1964
    %v1984 = vtanh.pop %v1965
    %v1985 = vtanh.pop %v1966
    %v1986 = vtanh.pop %v1967
    %v1987 = vtanh.pop %v1968
    %v1988 = vtanh.pop %v1969
    %v1989 = vtanh.pop %v1970
    %v1990 = vtanh.pop %v1971
    %v1991 = vtanh.pop %v1972
    %v1992 = vtanh.pop %v1973
    %v1993 = vtanh.pop %v1974
    %v1994 = vtanh.pop %v1975
    %v1995 = vtanh.pop %v1976
    %v1996 = vadd.f32 %v1977, 1.0
    %v1997 = vadd.f32 %v1978, 1.0
    %v1998 = vadd.f32 %v1979, 1.0
    %v1999 = vadd.f32 %v1980, 1.0
    %v2000 = vadd.f32 %v1981, 1.0
    %v2001 = vadd.f32 %v1982, 1.0
    %v2002 = vadd.f32 %v1983, 1.0
    %v2003 = vadd.f32 %v1984, 1.0
    %v2004 = vadd.f32 %v1985, 1.0
    %v2005 = vadd.f32 %v1986, 1.0
    %v2006 = vadd.f32 %v1987, 1.0
    %v2007 = vadd.f32 %v1988, 1.0
    %v2008 = vadd.f32 %v1989, 1.0
    %v2009 = vadd.f32 %v1990, 1.0
    %v2010 = vadd.f32 %v1991, 1.0
    %v2011 = vadd.f32 %v1992, 1.0
    %v2012 = vadd.f32 %v1993, 1.0
    %v2013 = vadd.f32 %v1994, 1.0
    %v2014 = vadd.f32 %v1995, 1.0
    %v2015 = vmul.f32 %v1996, 0.5
    %v2016 = vmul.f32 %v1997, 0.5
    %v2017 = vmul.f32 %v1998, 0.5
    %v2018 = vmul.f32 %v1999, 0.5
    %v2019 = vmul.f32 %v2000, 0.5
    %v2020 = vmul.f32 %v2001, 0.5
    %v2021 = vmul.f32 %v2002, 0.5
    %v2022 = vmul.f32 %v2003, 0.5
    %v2023 = vmul.f32 %v2004, 0.5
    %v2024 = vmul.f32 %v2005, 0.5
    %v2025 = vmul.f32 %v2006, 0.5
    %v2026 = vmul.f32 %v2007, 0.5
    %v2027 = vmul.f32 %v2008, 0.5
    %v2028 = vmul.f32 %v2009, 0.5
    %v2029 = vmul.f32 %v2010, 0.5
    %v2030 = vmul.f32 %v2011, 0.5
    %v2031 = vmul.f32 %v2012, 0.5
    %v2032 = vmul.f32 %v2013, 0.5
    %v2033 = vmul.f32 %v2014, 0.5
    %2034 = vst [vmem:[#allocation10] sm:$0xff] %v2015
    %2035 = vst [vmem:[#allocation10 + $0x8] sm:$0xff] %v2016
    %2036 = vst [vmem:[#allocation10 + $0x10] sm:$0xff] %v2017
    %2037 = vst [vmem:[#allocation10 + $0x18] sm:$0xff] %v2018
    %2038 = vst [vmem:[#allocation10 + $0x20] sm:$0xff] %v2019
    %2039 = vst [vmem:[#allocation10 + $0x28] sm:$0xff] %v2020
    %2040 = vst [vmem:[#allocation10 + $0x30] sm:$0xff] %v2021
    %2041 = vst [vmem:[#allocation10 + $0x38] sm:$0xff] %v2022
    %2042 = vst [vmem:[#allocation10 + $0x40] sm:$0xff] %v2023
    %2043 = vst [vmem:[#allocation10 + $0x48] sm:$0xff] %v2024
    %2044 = vst [vmem:[#allocation10 + $0x50] sm:$0xff] %v2025
    %2045 = vst [vmem:[#allocation10 + $0x58] sm:$0xff] %v2026
    %2046 = vst [vmem:[#allocation10 + $0x60] sm:$0xff] %v2027
    %2047 = vst [vmem:[#allocation10 + $0x68] sm:$0xff] %v2028
    %2048 = vst [vmem:[#allocation10 + $0x70] sm:$0xff] %v2029
    %2049 = vst [vmem:[#allocation10 + $0x78] sm:$0xff] %v2030
    %2050 = vst [vmem:[#allocation10 + $0x80] sm:$0xff] %v2031
    %2051 = vst [vmem:[#allocation10 + $0x88] sm:$0xff] %v2032
    %2052 = vst [vmem:[#allocation10 + $0x90] sm:$0xff] %v2033
    // Predicated region
    $region38: #{tpu_custom_call.1} parent=1 // pred_check
      _
    $region39: #{tpu_custom_call.1} parent=1 // pred_check_branch
      %2054 = sbr.rel (0) target = $region41
    $region40: #{tpu_custom_call.1} parent=1 // pred_region
      %s2056 = ssub.s32 2432, 2432
      %2057 = vsyncadd [#allocation4], %s2056
      %s2059 = sshll.u32 [#allocation10], 4
      %s2060 = int_to_ptr.vmem [resolvable:$true] %s2059
      %2062 = dma.vmem_to_hbm [thread:$0]  %s2060, 2432, %s5, [#allocation4]
    $region41: #{tpu_custom_call.1} parent=1 // pred_fallthru
      _
    // Predicated region
    $region42: #{tpu_custom_call.1} parent=1 // pred_check
      _
    $region43: #{tpu_custom_call.1} parent=1 // pred_check_branch
      %2064 = sbr.rel (0) target = $region45
    $region44: #{tpu_custom_call.1} parent=1 // pred_region
      %2065 = dma.done [#allocation4], 2432
    $region45: #{tpu_custom_call.1} parent=1 // pred_fallthru
      _
    %2066 = vsyncpa [#allocation3], 1
    %2067 = vsyncpa [#allocation6], 1
    %2068 = vsyncpa [#allocation9], 1
    %2069 = vsyncpa [#allocation4], 1

</llo_original>
